<compile_context>
chip_gen: v5e
topology: v5e:2x2
jax: 0.10.0
libtpu: 0.0.40
codegen_flags: <defaults>
</compile_context>

<pallas_src>
import jax
import jax.numpy as jnp
import numpy as np
from jax.experimental import pallas as pl
from jax.experimental.pallas import tpu as pltpu

IN_FEATURES = 2500   # nn.Linear(2500, 50) -> input feature dim
H1 = 50
H2 = 20
OUT = 2

# MXU/lane-friendly padded hidden dims (padding is zero-filled -> inert).
H1_PAD = 128
H2_PAD = 128
OUT_PAD = 128        # fc3 weight columns stay MXU-padded; output array is not.


def _round_up(x, m):
    return (x + m - 1) // m * m


def _cdiv(a, b):
    return -(-a // b)


def net_kernel(x_ref, w1_ref, b1_ref, w2_ref, b2_ref, w3_ref, b3_ref, o_ref):
    """fc1 -> fc2 -> tanh -> fc3 fused for one batch tile.

    x arrives as f32 straight from HBM (no separate host-side pad/cast pass);
    the bf16 cast for the MXU happens here and is hidden under the x DMA.
    Matmuls use bf16 operands with f32 accumulation; bias adds and tanh stay
    f32 (required on v5e, which lacks bf16 VPU/EUP).
    """
    x = x_ref[...].astype(jnp.bfloat16)                                # (tb, 2500)
    h1 = jnp.dot(x, w1_ref[...],
                 preferred_element_type=jnp.float32) + b1_ref[...]     # (tb, 128) f32
    h2 = jnp.dot(h1.astype(jnp.bfloat16), w2_ref[...],
                 preferred_element_type=jnp.float32) + b2_ref[...]     # (tb, 128) f32
    h2 = jnp.tanh(h2)                                                  # f32 tanh (EUP)
    o = jnp.dot(h2.astype(jnp.bfloat16), w3_ref[...],
                preferred_element_type=jnp.float32) + b3_ref[...]      # (tb, 128) f32
    o_ref[...] = o[:, :OUT]                                            # (tb, 2) store


def net_forward(x, padded_params, *, block_rows=1024):
    """Run the fused Net forward pass. `x` is (B, 2500) float32, returns (B, 2) f32."""
    w1, b1, w2, b2, w3, b3 = padded_params
    B = x.shape[0]

    # Batch tiling: pick the number of tiles first, then size each tile to
    # cover B with minimal padding (rounded to 16 = bf16 sublane tile).
    # This avoids the round_up(B, tb) footgun where an unlucky B nearly
    # doubles the processed rows.
    n_target = max(1, _cdiv(B, block_rows))
    tb = _round_up(_cdiv(B, n_target), 16)
    n_blocks = _cdiv(B, tb)
    b_pad = n_blocks * tb

    # Only the (small) batch remainder gets padded; no K padding, no cast pass.
    x_p = x if b_pad == B else jnp.pad(x, ((0, b_pad - B), (0, 0)))

    bytes_accessed = (b_pad * IN_FEATURES * 4                 # f32 x stream
                      + (w1.size + w2.size + w3.size) * 2     # bf16 weights (once)
                      + (b1.size + b2.size + b3.size) * 4     # f32 biases (once)
                      + b_pad * OUT * 4)                      # f32 logits
    cost = pl.CostEstimate(
        flops=2 * b_pad * (IN_FEATURES * H1_PAD + H1_PAD * H2_PAD + H2_PAD * OUT_PAD),
        transcendentals=b_pad * H2_PAD,
        bytes_accessed=bytes_accessed)

    out = pl.pallas_call(
        net_kernel,
        out_shape=jax.ShapeDtypeStruct((b_pad, OUT), jnp.float32),
        grid=(n_blocks,),
        in_specs=[
            # x: streamed f32, one batch tile per grid step (double-buffered);
            # last dim 2500 equals the full array dim, so the block is legal.
            pl.BlockSpec((tb, IN_FEATURES), lambda i: (i, 0)),
            # Weights / biases: constant index_map -> DMA'd once, VMEM-resident.
            pl.BlockSpec((IN_FEATURES, H1_PAD), lambda i: (0, 0)),
            pl.BlockSpec((1, H1_PAD), lambda i: (0, 0)),
            pl.BlockSpec((H1_PAD, H2_PAD), lambda i: (0, 0)),
            pl.BlockSpec((1, H2_PAD), lambda i: (0, 0)),
            pl.BlockSpec((H2_PAD, OUT_PAD), lambda i: (0, 0)),
            pl.BlockSpec((1, OUT_PAD), lambda i: (0, 0)),
        ],
        # Output block last dim 2 equals the full array dim (legal); only
        # 8 useful bytes per row hit HBM instead of 512.
        out_specs=pl.BlockSpec((tb, OUT), lambda i: (i, 0)),
        compiler_params=pltpu.CompilerParams(
            dimension_semantics=("parallel",),        # megacore split on v7x
            vmem_limit_bytes=48 * 1024 * 1024),       # tb=1024 windows > v5e 16 MiB default
        cost_estimate=cost,
    )(x_p, w1, b1, w2, b2, w3, b3)

    return out if b_pad == B else out[:B]


def init_params(key):
    """Deterministic synthetic parameters matching nn.Linear shapes (f32,
    unpadded, weights stored as (in, out) so the kernel computes x @ W + b)."""
    k1, k2, k3, k4, k5, k6 = jax.random.split(key, 6)

    def uniform(k, shape, fan_in):
        bound = 1.0 / np.sqrt(fan_in)
        return jax.random.uniform(k, shape, jnp.float32, -bound, bound)

    w1 = uniform(k1, (IN_FEATURES, H1), IN_FEATURES)
    b1 = uniform(k2, (1, H1), IN_FEATURES)
    w2 = uniform(k3, (H1, H2), H1)
    b2 = uniform(k4, (1, H2), H1)
    w3 = uniform(k5, (H2, OUT), H2)
    b3 = uniform(k6, (1, OUT), H2)
    return (w1, b1, w2, b2, w3, b3)


def pad_params(params):
    """Zero-pad hidden dims to 128-multiples; weights bf16 (MXU operands),
    biases f32 (added after f32 accumulation). fc1 K dim stays at 2500 to
    match the un-padded x stream."""
    w1, b1, w2, b2, w3, b3 = params

    def pad_w(w, rows, cols):
        return jnp.pad(w.astype(jnp.bfloat16),
                       ((0, rows - w.shape[0]), (0, cols - w.shape[1])))

    def pad_b(b, cols):
        return jnp.pad(b, ((0, 0), (0, cols - b.shape[1])))

    return (pad_w(w1, IN_FEATURES, H1_PAD), pad_b(b1, H1_PAD),
            pad_w(w2, H1_PAD, H2_PAD), pad_b(b2, H2_PAD),
            pad_w(w3, H2_PAD, OUT_PAD), pad_b(b3, OUT_PAD))


def net_forward_ref(x, params):
    """Pure-JAX reference with the exact same mixed precision as the kernel
    (bf16 matmul operands, f32 accumulation / bias / tanh)."""
    w1, b1, w2, b2, w3, b3 = params
    h1 = jnp.dot(x.astype(jnp.bfloat16), w1.astype(jnp.bfloat16),
                 preferred_element_type=jnp.float32) + b1
    h2 = jnp.dot(h1.astype(jnp.bfloat16), w2.astype(jnp.bfloat16),
                 preferred_element_type=jnp.float32) + b2
    h2 = jnp.tanh(h2)
    return jnp.dot(h2.astype(jnp.bfloat16), w3.astype(jnp.bfloat16),
                   preferred_element_type=jnp.float32) + b3


if __name__ == "__main__":
    key = jax.random.PRNGKey(0)
    kx, kp = jax.random.split(key)

    params = init_params(kp)
    padded = pad_params(params)

    # Small batch (latency-bound path, single grid step; batch padded 8 -> 16).
    B = 8
    x = jax.random.normal(kx, (B, IN_FEATURES), dtype=jnp.float32)
    out = jax.block_until_ready(net_forward(x, padded))
    ref = net_forward_ref(x, params)
    np.testing.assert_allclose(np.asarray(out), np.asarray(ref),
                               rtol=1e-3, atol=1e-3)

    # Larger batch exercising the pipelined multi-tile grid and the minimal
    # batch-padding logic (160 rows -> 3 tiles of 64).
    B2 = 160
    x2 = jax.random.normal(jax.random.PRNGKey(1), (B2, IN_FEATURES),
                           dtype=jnp.float32)
    out2 = jax.block_until_ready(net_forward(x2, padded, block_rows=64))
    ref2 = net_forward_ref(x2, params)
    np.testing.assert_allclose(np.asarray(out2), np.asarray(ref2),
                               rtol=1e-3, atol=1e-3)

    print("KERNEL_OK")
</pallas_src>

<mosaic_0001>
module attributes {stable_mosaic.version = 11 : i64} {
  func.func @net_kernel(%arg0: i32, %arg1: memref<16x2500xf32, #tpu.memory_space<vmem>>, %arg2: memref<2500x128xbf16, #tpu.memory_space<vmem>>, %arg3: memref<1x128xf32, #tpu.memory_space<vmem>>, %arg4: memref<128x128xbf16, #tpu.memory_space<vmem>>, %arg5: memref<1x128xf32, #tpu.memory_space<vmem>>, %arg6: memref<128x128xbf16, #tpu.memory_space<vmem>>, %arg7: memref<1x128xf32, #tpu.memory_space<vmem>>, %arg8: memref<16x2xf32, #tpu.memory_space<vmem>>) attributes {dimension_semantics = [#tpu.dimension_semantics<parallel>], iteration_bounds = array<i64: 1>, scalar_prefetch = 0 : i64, scratch_operands = 0 : i64, tpu.core_type = #tpu.core_type<tc>, window_params = [{transform_indices = @transform_0, window_bounds = array<i64: 16, 2500>}, {pipeline_mode = #tpu.pipeline_mode<synchronous>, transform_indices = @transform_1, window_bounds = array<i64: 2500, 128>}, {pipeline_mode = #tpu.pipeline_mode<synchronous>, transform_indices = @transform_2, window_bounds = array<i64: 1, 128>}, {pipeline_mode = #tpu.pipeline_mode<synchronous>, transform_indices = @transform_3, window_bounds = array<i64: 128, 128>}, {pipeline_mode = #tpu.pipeline_mode<synchronous>, transform_indices = @transform_4, window_bounds = array<i64: 1, 128>}, {pipeline_mode = #tpu.pipeline_mode<synchronous>, transform_indices = @transform_5, window_bounds = array<i64: 128, 128>}, {pipeline_mode = #tpu.pipeline_mode<synchronous>, transform_indices = @transform_6, window_bounds = array<i64: 1, 128>}, {transform_indices = @transform_7, window_bounds = array<i64: 16, 2>}]} {
    %c0 = arith.constant 0 : index
    %c0_0 = arith.constant 0 : index
    %0 = vector.load %arg1[%c0, %c0_0] : memref<16x2500xf32, #tpu.memory_space<vmem>>, vector<16x2500xf32>
    %1 = arith.truncf %0 : vector<16x2500xf32> to vector<16x2500xbf16>
    %c0_1 = arith.constant 0 : index
    %c0_2 = arith.constant 0 : index
    %2 = vector.load %arg2[%c0_1, %c0_2] : memref<2500x128xbf16, #tpu.memory_space<vmem>>, vector<2500x128xbf16>
    %cst = arith.constant dense<0.000000e+00> : vector<16x128xf32>
    %3 = tpu.matmul %1, %2, %cst {dimension_numbers = #tpu.dot_dimension_numbers<[1], [0], [0], [1], [0, 0, 1, 1], [], []>} : vector<16x2500xbf16>, vector<2500x128xbf16>, vector<16x128xf32> -> vector<16x128xf32>
    %c0_3 = arith.constant 0 : index
    %c0_4 = arith.constant 0 : index
    %4 = vector.load %arg3[%c0_3, %c0_4] : memref<1x128xf32, #tpu.memory_space<vmem>>, vector<1x128xf32>
    %5 = vector.broadcast %4 : vector<1x128xf32> to vector<16x128xf32>
    %6 = arith.addf %3, %5 : vector<16x128xf32>
    %7 = arith.truncf %6 : vector<16x128xf32> to vector<16x128xbf16>
    %c0_5 = arith.constant 0 : index
    %c0_6 = arith.constant 0 : index
    %8 = vector.load %arg4[%c0_5, %c0_6] : memref<128x128xbf16, #tpu.memory_space<vmem>>, vector<128x128xbf16>
    %cst_7 = arith.constant dense<0.000000e+00> : vector<16x128xf32>
    %9 = tpu.matmul %7, %8, %cst_7 {dimension_numbers = #tpu.dot_dimension_numbers<[1], [0], [0], [1], [0, 0, 1, 1], [], []>} : vector<16x128xbf16>, vector<128x128xbf16>, vector<16x128xf32> -> vector<16x128xf32>
    %c0_8 = arith.constant 0 : index
    %c0_9 = arith.constant 0 : index
    %10 = vector.load %arg5[%c0_8, %c0_9] : memref<1x128xf32, #tpu.memory_space<vmem>>, vector<1x128xf32>
    %11 = vector.broadcast %10 : vector<1x128xf32> to vector<16x128xf32>
    %12 = arith.addf %9, %11 : vector<16x128xf32>
    %13 = math.tanh %12 : vector<16x128xf32>
    %14 = arith.truncf %13 : vector<16x128xf32> to vector<16x128xbf16>
    %c0_10 = arith.constant 0 : index
    %c0_11 = arith.constant 0 : index
    %15 = vector.load %arg6[%c0_10, %c0_11] : memref<128x128xbf16, #tpu.memory_space<vmem>>, vector<128x128xbf16>
    %cst_12 = arith.constant dense<0.000000e+00> : vector<16x128xf32>
    %16 = tpu.matmul %14, %15, %cst_12 {dimension_numbers = #tpu.dot_dimension_numbers<[1], [0], [0], [1], [0, 0, 1, 1], [], []>} : vector<16x128xbf16>, vector<128x128xbf16>, vector<16x128xf32> -> vector<16x128xf32>
    %c0_13 = arith.constant 0 : index
    %c0_14 = arith.constant 0 : index
    %17 = vector.load %arg7[%c0_13, %c0_14] : memref<1x128xf32, #tpu.memory_space<vmem>>, vector<1x128xf32>
    %18 = vector.broadcast %17 : vector<1x128xf32> to vector<16x128xf32>
    %19 = arith.addf %16, %18 : vector<16x128xf32>
    %20 = vector.extract_strided_slice %19 {offsets = [0, 0], sizes = [16, 2], strides = [1, 1]} : vector<16x128xf32> to vector<16x2xf32>
    %c0_15 = arith.constant 0 : index
    %c0_16 = arith.constant 0 : index
    %21 = vector.load %arg8[%c0_15, %c0_16] : memref<16x2xf32, #tpu.memory_space<vmem>>, vector<16x2xf32>
    tpu.vector_store %arg8[%c0_15, %c0_16], %20 {strides = array<i32>} : memref<16x2xf32, #tpu.memory_space<vmem>>, vector<16x2xf32>,
    return
  }
  func.func @transform_0(%arg0: i32) -> (i32, i32) {
    %c0_i32 = arith.constant 0 : i32
    %c0_i32_0 = arith.constant 0 : i32
    return %arg0, %c0_i32 : i32, i32
  }
  func.func @transform_1(%arg0: i32) -> (i32, i32) {
    %c0_i32 = arith.constant 0 : i32
    %c0_i32_0 = arith.constant 0 : i32
    %c0_i32_1 = arith.constant 0 : i32
    return %c0_i32, %c0_i32_0 : i32, i32
  }
  func.func @transform_2(%arg0: i32) -> (i32, i32) {
    %c0_i32 = arith.constant 0 : i32
    %c0_i32_0 = arith.constant 0 : i32
    %c0_i32_1 = arith.constant 0 : i32
    return %c0_i32, %c0_i32_0 : i32, i32
  }
  func.func @transform_3(%arg0: i32) -> (i32, i32) {
    %c0_i32 = arith.constant 0 : i32
    %c0_i32_0 = arith.constant 0 : i32
    %c0_i32_1 = arith.constant 0 : i32
    return %c0_i32, %c0_i32_0 : i32, i32
  }
  func.func @transform_4(%arg0: i32) -> (i32, i32) {
    %c0_i32 = arith.constant 0 : i32
    %c0_i32_0 = arith.constant 0 : i32
    %c0_i32_1 = arith.constant 0 : i32
    return %c0_i32, %c0_i32_0 : i32, i32
  }
  func.func @transform_5(%arg0: i32) -> (i32, i32) {
    %c0_i32 = arith.constant 0 : i32
    %c0_i32_0 = arith.constant 0 : i32
    %c0_i32_1 = arith.constant 0 : i32
    return %c0_i32, %c0_i32_0 : i32, i32
  }
  func.func @transform_6(%arg0: i32) -> (i32, i32) {
    %c0_i32 = arith.constant 0 : i32
    %c0_i32_0 = arith.constant 0 : i32
    %c0_i32_1 = arith.constant 0 : i32
    return %c0_i32, %c0_i32_0 : i32, i32
  }
  func.func @transform_7(%arg0: i32) -> (i32, i32) {
    %c0_i32 = arith.constant 0 : i32
    %c0_i32_0 = arith.constant 0 : i32
    return %arg0, %c0_i32 : i32, i32
  }
}

</mosaic_0001>

<llo_original>
// kernel: tpu_custom_call.1
$region0: #{tpu_custom_call.1}
  #allocation0 [shape = 'u32[]', space=smem, size = 0x4, offset = 0x4, fixed_abs, tag = 'smem constant byte address 0x4 - core index']
  #allocation1 [shape = 'u32[72,128]{1,0:T(1,128)}', space=vmem, size = 0x9000, scoped, tag = 'internal scratch']
  %s0 = inlined_call_operand.hbm [shape: f32[16,2500], index: 0, kind: input, shape index: {}]
  %s1 = inlined_call_operand.hbm [shape: bf16[2500,128], index: 1, kind: input, shape index: {}]
  %s2 = inlined_call_operand.vmem [shape: f32[1,128], index: 2, kind: input, shape index: {}]
  %s3 = inlined_call_operand.hbm [shape: bf16[128,128], index: 3, kind: input, shape index: {}]
  %s4 = inlined_call_operand.vmem [shape: f32[1,128], index: 4, kind: input, shape index: {}]
  %s5 = inlined_call_operand.hbm [shape: bf16[128,128], index: 5, kind: input, shape index: {}]
  %s6 = inlined_call_operand.vmem [shape: f32[1,128], index: 6, kind: input, shape index: {}]
  %s7 = inlined_call_operand.vmem [shape: f32[16,2], index: 7, kind: output, shape index: {}]
  %s8 = sld [smem:[#allocation0]]
  $region54: #{tpu_custom_call.1} parent=0
    _
  %s10 = ssub.s32 1, %s8
  %s11 = scalar_select 0, %s10, %s8
  $region1: #{tpu_custom_call.1} parent=0
    #allocation2 [shape = 'u8[163840]{0}', space=vmem, size = 0x28000, scoped, tag = 'input window, operand 0, single buffered']
    #allocation3 [shape = 's32[1]{0}', space=sflag, size = 0x4, scoped, tag = 'scoped memory for tpu_custom_call.1']
    #allocation4 [shape = 'u8[641024]{0}', space=vmem, size = 0x9c800, scoped, tag = 'input window, operand 1, single buffered']
    #allocation5 [shape = 's32[1]{0}', space=sflag, size = 0x4, scoped, tag = 'scoped memory for tpu_custom_call.1']
    #allocation6 [shape = 'u8[32768]{0}', space=vmem, size = 0x8000, scoped, tag = 'input window, operand 3, single buffered']
    #allocation7 [shape = 'u8[32768]{0}', space=vmem, size = 0x8000, scoped, tag = 'input window, operand 5, single buffered']
    #allocation8 [shape = 's32[1]{0}', space=sflag, size = 0x4, scoped, tag = 'scoped memory for tpu_custom_call.1']
    %12 = vsyncpa [#allocation3], 0
    %13 = vsyncpa [#allocation5], 0
    %14 = vsyncpa [#allocation8], 0
    // Predicated region
    $region2: #{tpu_custom_call.1} parent=1 // pred_check
      _
    $region3: #{tpu_custom_call.1} parent=1 // pred_check_branch
      %16 = sbr.rel (0) target = $region5
    $region4: #{tpu_custom_call.1} parent=1 // pred_region
      %18 = vsyncadd [#allocation3], 0
      %s19 = sshll.u32 %s0, 4
      %s20 = int_to_ptr.hbm [resolvable:$true] %s19
      %s21 = sshll.u32 [#allocation2], 4
      %s22 = int_to_ptr.vmem [resolvable:$true] %s21
      %27 = dma.hbm_to_vmem [thread:$0]  %s20, 5120, %s22, [#allocation3], 2560, 2560, 160
    $region5: #{tpu_custom_call.1} parent=1 // pred_fallthru
      _
    // Predicated region
    $region6: #{tpu_custom_call.1} parent=1 // pred_check
      _
    $region7: #{tpu_custom_call.1} parent=1 // pred_check_branch
      %29 = sbr.rel (0) target = $region9
    $region8: #{tpu_custom_call.1} parent=1 // pred_region
      %31 = vsyncadd [#allocation5], 0
      %s32 = sshll.u32 %s1, 4
      %s33 = int_to_ptr.hbm [resolvable:$true] %s32
      %s34 = sshll.u32 [#allocation4], 4
      %s35 = int_to_ptr.vmem [resolvable:$true] %s34
      %40 = dma.hbm_to_vmem [thread:$0]  %s33, 20032, %s35, [#allocation5], 64, 64, 4
    $region9: #{tpu_custom_call.1} parent=1 // pred_fallthru
      _
    // Predicated region
    $region10: #{tpu_custom_call.1} parent=1 // pred_check
      _
    $region11: #{tpu_custom_call.1} parent=1 // pred_check_branch
      %42 = sbr.rel (0) target = $region13
    $region12: #{tpu_custom_call.1} parent=1 // pred_region
      _
    $region13: #{tpu_custom_call.1} parent=1 // pred_fallthru
      _
    // Predicated region
    $region14: #{tpu_custom_call.1} parent=1 // pred_check
      _
    $region15: #{tpu_custom_call.1} parent=1 // pred_check_branch
      %44 = sbr.rel (0) target = $region17
    $region16: #{tpu_custom_call.1} parent=1 // pred_region
      %46 = vsyncadd [#allocation5], 0
      %s47 = sshll.u32 %s3, 4
      %s48 = int_to_ptr.hbm [resolvable:$true] %s47
      %s49 = sshll.u32 [#allocation6], 4
      %s50 = int_to_ptr.vmem [resolvable:$true] %s49
      %55 = dma.hbm_to_vmem [thread:$0]  %s48, 1024, %s50, [#allocation5], 64, 64, 4
    $region17: #{tpu_custom_call.1} parent=1 // pred_fallthru
      _
    // Predicated region
    $region18: #{tpu_custom_call.1} parent=1 // pred_check
      _
    $region19: #{tpu_custom_call.1} parent=1 // pred_check_branch
      %57 = sbr.rel (0) target = $region21
    $region20: #{tpu_custom_call.1} parent=1 // pred_region
      _
    $region21: #{tpu_custom_call.1} parent=1 // pred_fallthru
      _
    // Predicated region
    $region22: #{tpu_custom_call.1} parent=1 // pred_check
      _
    $region23: #{tpu_custom_call.1} parent=1 // pred_check_branch
      %59 = sbr.rel (0) target = $region25
    $region24: #{tpu_custom_call.1} parent=1 // pred_region
      %61 = vsyncadd [#allocation8], 0
      %s62 = sshll.u32 %s5, 4
      %s63 = int_to_ptr.hbm [resolvable:$true] %s62
      %s64 = sshll.u32 [#allocation7], 4
      %s65 = int_to_ptr.vmem [resolvable:$true] %s64
      %70 = dma.hbm_to_vmem [thread:$0]  %s63, 1024, %s65, [#allocation8], 64, 64, 4
    $region25: #{tpu_custom_call.1} parent=1 // pred_fallthru
      _
    // Predicated region
    $region26: #{tpu_custom_call.1} parent=1 // pred_check
      _
    $region27: #{tpu_custom_call.1} parent=1 // pred_check_branch
      %72 = sbr.rel (0) target = $region29
    $region28: #{tpu_custom_call.1} parent=1 // pred_region
      _
    $region29: #{tpu_custom_call.1} parent=1 // pred_fallthru
      _
    // Predicated region
    $region30: #{tpu_custom_call.1} parent=1 // pred_check
      _
    $region31: #{tpu_custom_call.1} parent=1 // pred_check_branch
      %74 = sbr.rel (0) target = $region33
    $region32: #{tpu_custom_call.1} parent=1 // pred_region
      %76 = dma.done [#allocation3], 5120
    $region33: #{tpu_custom_call.1} parent=1 // pred_fallthru
      _
    // Predicated region
    $region34: #{tpu_custom_call.1} parent=1 // pred_check
      _
    $region35: #{tpu_custom_call.1} parent=1 // pred_check_branch
      %78 = sbr.rel (0) target = $region37
    $region36: #{tpu_custom_call.1} parent=1 // pred_region
      %80 = dma.done [#allocation5], 20032
    $region37: #{tpu_custom_call.1} parent=1 // pred_fallthru
      _
    // Predicated region
    $region38: #{tpu_custom_call.1} parent=1 // pred_check
      _
    $region39: #{tpu_custom_call.1} parent=1 // pred_check_branch
      %82 = sbr.rel (0) target = $region41
    $region40: #{tpu_custom_call.1} parent=1 // pred_region
      %84 = dma.done [#allocation5], 1024
    $region41: #{tpu_custom_call.1} parent=1 // pred_fallthru
      _
    // Predicated region
    $region42: #{tpu_custom_call.1} parent=1 // pred_check
      _
    $region43: #{tpu_custom_call.1} parent=1 // pred_check_branch
      %86 = sbr.rel (0) target = $region45
    $region44: #{tpu_custom_call.1} parent=1 // pred_region
      %88 = dma.done [#allocation8], 1024
    $region45: #{tpu_custom_call.1} parent=1 // pred_fallthru
      _
    %v90 = vld [vmem:[#allocation2] sm:$0xff]
    %v91 = vld [vmem:[#allocation2 + $0x8] sm:$0xff]
    %v92 = vld [vmem:[#allocation2 + $0x10] sm:$0xff]
    %v93 = vld [vmem:[#allocation2 + $0x18] sm:$0xff]
    %v94 = vld [vmem:[#allocation2 + $0x20] sm:$0xff]
    %v95 = vld [vmem:[#allocation2 + $0x28] sm:$0xff]
    %v96 = vld [vmem:[#allocation2 + $0x30] sm:$0xff]
    %v97 = vld [vmem:[#allocation2 + $0x38] sm:$0xff]
    %v98 = vld [vmem:[#allocation2 + $0x40] sm:$0xff]
    %v99 = vld [vmem:[#allocation2 + $0x48] sm:$0xff]
    %v100 = vld [vmem:[#allocation2 + $0x50] sm:$0xff]
    %v101 = vld [vmem:[#allocation2 + $0x58] sm:$0xff]
    %v102 = vld [vmem:[#allocation2 + $0x60] sm:$0xff]
    %v103 = vld [vmem:[#allocation2 + $0x68] sm:$0xff]
    %v104 = vld [vmem:[#allocation2 + $0x70] sm:$0xff]
    %v105 = vld [vmem:[#allocation2 + $0x78] sm:$0xff]
    %v106 = vld [vmem:[#allocation2 + $0x80] sm:$0xff]
    %v107 = vld [vmem:[#allocation2 + $0x88] sm:$0xff]
    %v108 = vld [vmem:[#allocation2 + $0x90] sm:$0xff]
    %v109 = vld [vmem:[#allocation2 + $0x98] sm:$0xff]
    %v110 = vld [vmem:[#allocation2 + $0xa0] sm:$0xff]
    %v111 = vld [vmem:[#allocation2 + $0xa8] sm:$0xff]
    %v112 = vld [vmem:[#allocation2 + $0xb0] sm:$0xff]
    %v113 = vld [vmem:[#allocation2 + $0xb8] sm:$0xff]
    %v114 = vld [vmem:[#allocation2 + $0xc0] sm:$0xff]
    %v115 = vld [vmem:[#allocation2 + $0xc8] sm:$0xff]
    %v116 = vld [vmem:[#allocation2 + $0xd0] sm:$0xff]
    %v117 = vld [vmem:[#allocation2 + $0xd8] sm:$0xff]
    %v118 = vld [vmem:[#allocation2 + $0xe0] sm:$0xff]
    %v119 = vld [vmem:[#allocation2 + $0xe8] sm:$0xff]
    %v120 = vld [vmem:[#allocation2 + $0xf0] sm:$0xff]
    %v121 = vld [vmem:[#allocation2 + $0xf8] sm:$0xff]
    %v122 = vld [vmem:[#allocation2 + $0x100] sm:$0xff]
    %v123 = vld [vmem:[#allocation2 + $0x108] sm:$0xff]
    %v124 = vld [vmem:[#allocation2 + $0x110] sm:$0xff]
    %v125 = vld [vmem:[#allocation2 + $0x118] sm:$0xff]
    %v126 = vld [vmem:[#allocation2 + $0x120] sm:$0xff]
    %v127 = vld [vmem:[#allocation2 + $0x128] sm:$0xff]
    %v128 = vld [vmem:[#allocation2 + $0x130] sm:$0xff]
    %v129 = vld [vmem:[#allocation2 + $0x138] sm:$0xff]
    %v130 = vpack.c.bf16 %v110, %v90
    %v131 = vpack.c.bf16 %v111, %v91
    %v132 = vpack.c.bf16 %v112, %v92
    %v133 = vpack.c.bf16 %v113, %v93
    %v134 = vpack.c.bf16 %v114, %v94
    %v135 = vpack.c.bf16 %v115, %v95
    %v136 = vpack.c.bf16 %v116, %v96
    %v137 = vpack.c.bf16 %v117, %v97
    %v138 = vpack.c.bf16 %v118, %v98
    %v139 = vpack.c.bf16 %v119, %v99
    %v140 = vpack.c.bf16 %v120, %v100
    %v141 = vpack.c.bf16 %v121, %v101
    %v142 = vpack.c.bf16 %v122, %v102
    %v143 = vpack.c.bf16 %v123, %v103
    %v144 = vpack.c.bf16 %v124, %v104
    %v145 = vpack.c.bf16 %v125, %v105
    %v146 = vpack.c.bf16 %v126, %v106
    %v147 = vpack.c.bf16 %v127, %v107
    %v148 = vpack.c.bf16 %v128, %v108
    %v149 = vpack.c.bf16 %v129, %v109
    %v150 = vld [vmem:[#allocation4] sm:$0xf]
    %v151 = vld [vmem:[#allocation4 + $0x4] sm:$0xf]
    %v152 = vld [vmem:[#allocation4 + $0x8] sm:$0xf]
    %v153 = vld [vmem:[#allocation4 + $0xc] sm:$0xf]
    %v154 = vld [vmem:[#allocation4 + $0x10] sm:$0xf]
    %v155 = vld [vmem:[#allocation4 + $0x14] sm:$0xf]
    %v156 = vld [vmem:[#allocation4 + $0x18] sm:$0xf]
    %v157 = vld [vmem:[#allocation4 + $0x1c] sm:$0xf]
    %v158 = vld [vmem:[#allocation4 + $0x20] sm:$0xf]
    %v159 = vld [vmem:[#allocation4 + $0x24] sm:$0xf]
    %v160 = vld [vmem:[#allocation4 + $0x28] sm:$0xf]
    %v161 = vld [vmem:[#allocation4 + $0x2c] sm:$0xf]
    %v162 = vld [vmem:[#allocation4 + $0x30] sm:$0xf]
    %v163 = vld [vmem:[#allocation4 + $0x34] sm:$0xf]
    %v164 = vld [vmem:[#allocation4 + $0x38] sm:$0xf]
    %v165 = vld [vmem:[#allocation4 + $0x3c] sm:$0xf]
    %v166 = vld [vmem:[#allocation4 + $0x40] sm:$0xf]
    %v167 = vld [vmem:[#allocation4 + $0x44] sm:$0xf]
    %v168 = vld [vmem:[#allocation4 + $0x48] sm:$0xf]
    %v169 = vld [vmem:[#allocation4 + $0x4c] sm:$0xf]
    %v170 = vld [vmem:[#allocation4 + $0x50] sm:$0xf]
    %v171 = vld [vmem:[#allocation4 + $0x54] sm:$0xf]
    %v172 = vld [vmem:[#allocation4 + $0x58] sm:$0xf]
    %v173 = vld [vmem:[#allocation4 + $0x5c] sm:$0xf]
    %v174 = vld [vmem:[#allocation4 + $0x60] sm:$0xf]
    %v175 = vld [vmem:[#allocation4 + $0x64] sm:$0xf]
    %v176 = vld [vmem:[#allocation4 + $0x68] sm:$0xf]
    %v177 = vld [vmem:[#allocation4 + $0x6c] sm:$0xf]
    %v178 = vld [vmem:[#allocation4 + $0x70] sm:$0xf]
    %v179 = vld [vmem:[#allocation4 + $0x74] sm:$0xf]
    %v180 = vld [vmem:[#allocation4 + $0x78] sm:$0xf]
    %v181 = vld [vmem:[#allocation4 + $0x7c] sm:$0xf]
    %v182 = vld [vmem:[#allocation4 + $0x80] sm:$0xf]
    %v183 = vld [vmem:[#allocation4 + $0x84] sm:$0xf]
    %v184 = vld [vmem:[#allocation4 + $0x88] sm:$0xf]
    %v185 = vld [vmem:[#allocation4 + $0x8c] sm:$0xf]
    %v186 = vld [vmem:[#allocation4 + $0x90] sm:$0xf]
    %v187 = vld [vmem:[#allocation4 + $0x94] sm:$0xf]
    %v188 = vld [vmem:[#allocation4 + $0x98] sm:$0xf]
    %v189 = vld [vmem:[#allocation4 + $0x9c] sm:$0xf]
    %v190 = vld [vmem:[#allocation4 + $0xa0] sm:$0xf]
    %v191 = vld [vmem:[#allocation4 + $0xa4] sm:$0xf]
    %v192 = vld [vmem:[#allocation4 + $0xa8] sm:$0xf]
    %v193 = vld [vmem:[#allocation4 + $0xac] sm:$0xf]
    %v194 = vld [vmem:[#allocation4 + $0xb0] sm:$0xf]
    %v195 = vld [vmem:[#allocation4 + $0xb4] sm:$0xf]
    %v196 = vld [vmem:[#allocation4 + $0xb8] sm:$0xf]
    %v197 = vld [vmem:[#allocation4 + $0xbc] sm:$0xf]
    %v198 = vld [vmem:[#allocation4 + $0xc0] sm:$0xf]
    %v199 = vld [vmem:[#allocation4 + $0xc4] sm:$0xf]
    %v200 = vld [vmem:[#allocation4 + $0xc8] sm:$0xf]
    %v201 = vld [vmem:[#allocation4 + $0xcc] sm:$0xf]
    %v202 = vld [vmem:[#allocation4 + $0xd0] sm:$0xf]
    %v203 = vld [vmem:[#allocation4 + $0xd4] sm:$0xf]
    %v204 = vld [vmem:[#allocation4 + $0xd8] sm:$0xf]
    %v205 = vld [vmem:[#allocation4 + $0xdc] sm:$0xf]
    %v206 = vld [vmem:[#allocation4 + $0xe0] sm:$0xf]
    %v207 = vld [vmem:[#allocation4 + $0xe4] sm:$0xf]
    %v208 = vld [vmem:[#allocation4 + $0xe8] sm:$0xf]
    %v209 = vld [vmem:[#allocation4 + $0xec] sm:$0xf]
    %v210 = vld [vmem:[#allocation4 + $0xf0] sm:$0xf]
    %v211 = vld [vmem:[#allocation4 + $0xf4] sm:$0xf]
    %v212 = vld [vmem:[#allocation4 + $0xf8] sm:$0xf]
    %v213 = vld [vmem:[#allocation4 + $0xfc] sm:$0xf]
    %v214 = vld [vmem:[#allocation4 + $0x100] sm:$0xf]
    %v215 = vld [vmem:[#allocation4 + $0x104] sm:$0xf]
    %v216 = vld [vmem:[#allocation4 + $0x108] sm:$0xf]
    %v217 = vld [vmem:[#allocation4 + $0x10c] sm:$0xf]
    %v218 = vld [vmem:[#allocation4 + $0x110] sm:$0xf]
    %v219 = vld [vmem:[#allocation4 + $0x114] sm:$0xf]
    %v220 = vld [vmem:[#allocation4 + $0x118] sm:$0xf]
    %v221 = vld [vmem:[#allocation4 + $0x11c] sm:$0xf]
    %v222 = vld [vmem:[#allocation4 + $0x120] sm:$0xf]
    %v223 = vld [vmem:[#allocation4 + $0x124] sm:$0xf]
    %v224 = vld [vmem:[#allocation4 + $0x128] sm:$0xf]
    %v225 = vld [vmem:[#allocation4 + $0x12c] sm:$0xf]
    %v226 = vld [vmem:[#allocation4 + $0x130] sm:$0xf]
    %v227 = vld [vmem:[#allocation4 + $0x134] sm:$0xf]
    %v228 = vld [vmem:[#allocation4 + $0x138] sm:$0xf]
    %v229 = vld [vmem:[#allocation4 + $0x13c] sm:$0xf]
    %v230 = vld [vmem:[#allocation4 + $0x140] sm:$0xf]
    %v231 = vld [vmem:[#allocation4 + $0x144] sm:$0xf]
    %v232 = vld [vmem:[#allocation4 + $0x148] sm:$0xf]
    %v233 = vld [vmem:[#allocation4 + $0x14c] sm:$0xf]
    %v234 = vld [vmem:[#allocation4 + $0x150] sm:$0xf]
    %v235 = vld [vmem:[#allocation4 + $0x154] sm:$0xf]
    %v236 = vld [vmem:[#allocation4 + $0x158] sm:$0xf]
    %v237 = vld [vmem:[#allocation4 + $0x15c] sm:$0xf]
    %v238 = vld [vmem:[#allocation4 + $0x160] sm:$0xf]
    %v239 = vld [vmem:[#allocation4 + $0x164] sm:$0xf]
    %v240 = vld [vmem:[#allocation4 + $0x168] sm:$0xf]
    %v241 = vld [vmem:[#allocation4 + $0x16c] sm:$0xf]
    %v242 = vld [vmem:[#allocation4 + $0x170] sm:$0xf]
    %v243 = vld [vmem:[#allocation4 + $0x174] sm:$0xf]
    %v244 = vld [vmem:[#allocation4 + $0x178] sm:$0xf]
    %v245 = vld [vmem:[#allocation4 + $0x17c] sm:$0xf]
    %v246 = vld [vmem:[#allocation4 + $0x180] sm:$0xf]
    %v247 = vld [vmem:[#allocation4 + $0x184] sm:$0xf]
    %v248 = vld [vmem:[#allocation4 + $0x188] sm:$0xf]
    %v249 = vld [vmem:[#allocation4 + $0x18c] sm:$0xf]
    %v250 = vld [vmem:[#allocation4 + $0x190] sm:$0xf]
    %v251 = vld [vmem:[#allocation4 + $0x194] sm:$0xf]
    %v252 = vld [vmem:[#allocation4 + $0x198] sm:$0xf]
    %v253 = vld [vmem:[#allocation4 + $0x19c] sm:$0xf]
    %v254 = vld [vmem:[#allocation4 + $0x1a0] sm:$0xf]
    %v255 = vld [vmem:[#allocation4 + $0x1a4] sm:$0xf]
    %v256 = vld [vmem:[#allocation4 + $0x1a8] sm:$0xf]
    %v257 = vld [vmem:[#allocation4 + $0x1ac] sm:$0xf]
    %v258 = vld [vmem:[#allocation4 + $0x1b0] sm:$0xf]
    %v259 = vld [vmem:[#allocation4 + $0x1b4] sm:$0xf]
    %v260 = vld [vmem:[#allocation4 + $0x1b8] sm:$0xf]
    %v261 = vld [vmem:[#allocation4 + $0x1bc] sm:$0xf]
    %v262 = vld [vmem:[#allocation4 + $0x1c0] sm:$0xf]
    %v263 = vld [vmem:[#allocation4 + $0x1c4] sm:$0xf]
    %v264 = vld [vmem:[#allocation4 + $0x1c8] sm:$0xf]
    %v265 = vld [vmem:[#allocation4 + $0x1cc] sm:$0xf]
    %v266 = vld [vmem:[#allocation4 + $0x1d0] sm:$0xf]
    %v267 = vld [vmem:[#allocation4 + $0x1d4] sm:$0xf]
    %v268 = vld [vmem:[#allocation4 + $0x1d8] sm:$0xf]
    %v269 = vld [vmem:[#allocation4 + $0x1dc] sm:$0xf]
    %v270 = vld [vmem:[#allocation4 + $0x1e0] sm:$0xf]
    %v271 = vld [vmem:[#allocation4 + $0x1e4] sm:$0xf]
    %v272 = vld [vmem:[#allocation4 + $0x1e8] sm:$0xf]
    %v273 = vld [vmem:[#allocation4 + $0x1ec] sm:$0xf]
    %v274 = vld [vmem:[#allocation4 + $0x1f0] sm:$0xf]
    %v275 = vld [vmem:[#allocation4 + $0x1f4] sm:$0xf]
    %v276 = vld [vmem:[#allocation4 + $0x1f8] sm:$0xf]
    %v277 = vld [vmem:[#allocation4 + $0x1fc] sm:$0xf]
    %v278 = vld [vmem:[#allocation4 + $0x200] sm:$0xf]
    %v279 = vld [vmem:[#allocation4 + $0x204] sm:$0xf]
    %v280 = vld [vmem:[#allocation4 + $0x208] sm:$0xf]
    %v281 = vld [vmem:[#allocation4 + $0x20c] sm:$0xf]
    %v282 = vld [vmem:[#allocation4 + $0x210] sm:$0xf]
    %v283 = vld [vmem:[#allocation4 + $0x214] sm:$0xf]
    %v284 = vld [vmem:[#allocation4 + $0x218] sm:$0xf]
    %v285 = vld [vmem:[#allocation4 + $0x21c] sm:$0xf]
    %v286 = vld [vmem:[#allocation4 + $0x220] sm:$0xf]
    %v287 = vld [vmem:[#allocation4 + $0x224] sm:$0xf]
    %v288 = vld [vmem:[#allocation4 + $0x228] sm:$0xf]
    %v289 = vld [vmem:[#allocation4 + $0x22c] sm:$0xf]
    %v290 = vld [vmem:[#allocation4 + $0x230] sm:$0xf]
    %v291 = vld [vmem:[#allocation4 + $0x234] sm:$0xf]
    %v292 = vld [vmem:[#allocation4 + $0x238] sm:$0xf]
    %v293 = vld [vmem:[#allocation4 + $0x23c] sm:$0xf]
    %v294 = vld [vmem:[#allocation4 + $0x240] sm:$0xf]
    %v295 = vld [vmem:[#allocation4 + $0x244] sm:$0xf]
    %v296 = vld [vmem:[#allocation4 + $0x248] sm:$0xf]
    %v297 = vld [vmem:[#allocation4 + $0x24c] sm:$0xf]
    %v298 = vld [vmem:[#allocation4 + $0x250] sm:$0xf]
    %v299 = vld [vmem:[#allocation4 + $0x254] sm:$0xf]
    %v300 = vld [vmem:[#allocation4 + $0x258] sm:$0xf]
    %v301 = vld [vmem:[#allocation4 + $0x25c] sm:$0xf]
    %v302 = vld [vmem:[#allocation4 + $0x260] sm:$0xf]
    %v303 = vld [vmem:[#allocation4 + $0x264] sm:$0xf]
    %v304 = vld [vmem:[#allocation4 + $0x268] sm:$0xf]
    %v305 = vld [vmem:[#allocation4 + $0x26c] sm:$0xf]
    %v306 = vld [vmem:[#allocation4 + $0x270] sm:$0xf]
    %v307 = vld [vmem:[#allocation4 + $0x274] sm:$0xf]
    %v308 = vld [vmem:[#allocation4 + $0x278] sm:$0xf]
    %v309 = vld [vmem:[#allocation4 + $0x27c] sm:$0xf]
    %v310 = vld [vmem:[#allocation4 + $0x280] sm:$0xf]
    %v311 = vld [vmem:[#allocation4 + $0x284] sm:$0xf]
    %v312 = vld [vmem:[#allocation4 + $0x288] sm:$0xf]
    %v313 = vld [vmem:[#allocation4 + $0x28c] sm:$0xf]
    %v314 = vld [vmem:[#allocation4 + $0x290] sm:$0xf]
    %v315 = vld [vmem:[#allocation4 + $0x294] sm:$0xf]
    %v316 = vld [vmem:[#allocation4 + $0x298] sm:$0xf]
    %v317 = vld [vmem:[#allocation4 + $0x29c] sm:$0xf]
    %v318 = vld [vmem:[#allocation4 + $0x2a0] sm:$0xf]
    %v319 = vld [vmem:[#allocation4 + $0x2a4] sm:$0xf]
    %v320 = vld [vmem:[#allocation4 + $0x2a8] sm:$0xf]
    %v321 = vld [vmem:[#allocation4 + $0x2ac] sm:$0xf]
    %v322 = vld [vmem:[#allocation4 + $0x2b0] sm:$0xf]
    %v323 = vld [vmem:[#allocation4 + $0x2b4] sm:$0xf]
    %v324 = vld [vmem:[#allocation4 + $0x2b8] sm:$0xf]
    %v325 = vld [vmem:[#allocation4 + $0x2bc] sm:$0xf]
    %v326 = vld [vmem:[#allocation4 + $0x2c0] sm:$0xf]
    %v327 = vld [vmem:[#allocation4 + $0x2c4] sm:$0xf]
    %v328 = vld [vmem:[#allocation4 + $0x2c8] sm:$0xf]
    %v329 = vld [vmem:[#allocation4 + $0x2cc] sm:$0xf]
    %v330 = vld [vmem:[#allocation4 + $0x2d0] sm:$0xf]
    %v331 = vld [vmem:[#allocation4 + $0x2d4] sm:$0xf]
    %v332 = vld [vmem:[#allocation4 + $0x2d8] sm:$0xf]
    %v333 = vld [vmem:[#allocation4 + $0x2dc] sm:$0xf]
    %v334 = vld [vmem:[#allocation4 + $0x2e0] sm:$0xf]
    %v335 = vld [vmem:[#allocation4 + $0x2e4] sm:$0xf]
    %v336 = vld [vmem:[#allocation4 + $0x2e8] sm:$0xf]
    %v337 = vld [vmem:[#allocation4 + $0x2ec] sm:$0xf]
    %v338 = vld [vmem:[#allocation4 + $0x2f0] sm:$0xf]
    %v339 = vld [vmem:[#allocation4 + $0x2f4] sm:$0xf]
    %v340 = vld [vmem:[#allocation4 + $0x2f8] sm:$0xf]
    %v341 = vld [vmem:[#allocation4 + $0x2fc] sm:$0xf]
    %v342 = vld [vmem:[#allocation4 + $0x300] sm:$0xf]
    %v343 = vld [vmem:[#allocation4 + $0x304] sm:$0xf]
    %v344 = vld [vmem:[#allocation4 + $0x308] sm:$0xf]
    %v345 = vld [vmem:[#allocation4 + $0x30c] sm:$0xf]
    %v346 = vld [vmem:[#allocation4 + $0x310] sm:$0xf]
    %v347 = vld [vmem:[#allocation4 + $0x314] sm:$0xf]
    %v348 = vld [vmem:[#allocation4 + $0x318] sm:$0xf]
    %v349 = vld [vmem:[#allocation4 + $0x31c] sm:$0xf]
    %v350 = vld [vmem:[#allocation4 + $0x320] sm:$0xf]
    %v351 = vld [vmem:[#allocation4 + $0x324] sm:$0xf]
    %v352 = vld [vmem:[#allocation4 + $0x328] sm:$0xf]
    %v353 = vld [vmem:[#allocation4 + $0x32c] sm:$0xf]
    %v354 = vld [vmem:[#allocation4 + $0x330] sm:$0xf]
    %v355 = vld [vmem:[#allocation4 + $0x334] sm:$0xf]
    %v356 = vld [vmem:[#allocation4 + $0x338] sm:$0xf]
    %v357 = vld [vmem:[#allocation4 + $0x33c] sm:$0xf]
    %v358 = vld [vmem:[#allocation4 + $0x340] sm:$0xf]
    %v359 = vld [vmem:[#allocation4 + $0x344] sm:$0xf]
    %v360 = vld [vmem:[#allocation4 + $0x348] sm:$0xf]
    %v361 = vld [vmem:[#allocation4 + $0x34c] sm:$0xf]
    %v362 = vld [vmem:[#allocation4 + $0x350] sm:$0xf]
    %v363 = vld [vmem:[#allocation4 + $0x354] sm:$0xf]
    %v364 = vld [vmem:[#allocation4 + $0x358] sm:$0xf]
    %v365 = vld [vmem:[#allocation4 + $0x35c] sm:$0xf]
    %v366 = vld [vmem:[#allocation4 + $0x360] sm:$0xf]
    %v367 = vld [vmem:[#allocation4 + $0x364] sm:$0xf]
    %v368 = vld [vmem:[#allocation4 + $0x368] sm:$0xf]
    %v369 = vld [vmem:[#allocation4 + $0x36c] sm:$0xf]
    %v370 = vld [vmem:[#allocation4 + $0x370] sm:$0xf]
    %v371 = vld [vmem:[#allocation4 + $0x374] sm:$0xf]
    %v372 = vld [vmem:[#allocation4 + $0x378] sm:$0xf]
    %v373 = vld [vmem:[#allocation4 + $0x37c] sm:$0xf]
    %v374 = vld [vmem:[#allocation4 + $0x380] sm:$0xf]
    %v375 = vld [vmem:[#allocation4 + $0x384] sm:$0xf]
    %v376 = vld [vmem:[#allocation4 + $0x388] sm:$0xf]
    %v377 = vld [vmem:[#allocation4 + $0x38c] sm:$0xf]
    %v378 = vld [vmem:[#allocation4 + $0x390] sm:$0xf]
    %v379 = vld [vmem:[#allocation4 + $0x394] sm:$0xf]
    %v380 = vld [vmem:[#allocation4 + $0x398] sm:$0xf]
    %v381 = vld [vmem:[#allocation4 + $0x39c] sm:$0xf]
    %v382 = vld [vmem:[#allocation4 + $0x3a0] sm:$0xf]
    %v383 = vld [vmem:[#allocation4 + $0x3a4] sm:$0xf]
    %v384 = vld [vmem:[#allocation4 + $0x3a8] sm:$0xf]
    %v385 = vld [vmem:[#allocation4 + $0x3ac] sm:$0xf]
    %v386 = vld [vmem:[#allocation4 + $0x3b0] sm:$0xf]
    %v387 = vld [vmem:[#allocation4 + $0x3b4] sm:$0xf]
    %v388 = vld [vmem:[#allocation4 + $0x3b8] sm:$0xf]
    %v389 = vld [vmem:[#allocation4 + $0x3bc] sm:$0xf]
    %v390 = vld [vmem:[#allocation4 + $0x3c0] sm:$0xf]
    %v391 = vld [vmem:[#allocation4 + $0x3c4] sm:$0xf]
    %v392 = vld [vmem:[#allocation4 + $0x3c8] sm:$0xf]
    %v393 = vld [vmem:[#allocation4 + $0x3cc] sm:$0xf]
    %v394 = vld [vmem:[#allocation4 + $0x3d0] sm:$0xf]
    %v395 = vld [vmem:[#allocation4 + $0x3d4] sm:$0xf]
    %v396 = vld [vmem:[#allocation4 + $0x3d8] sm:$0xf]
    %v397 = vld [vmem:[#allocation4 + $0x3dc] sm:$0xf]
    %v398 = vld [vmem:[#allocation4 + $0x3e0] sm:$0xf]
    %v399 = vld [vmem:[#allocation4 + $0x3e4] sm:$0xf]
    %v400 = vld [vmem:[#allocation4 + $0x3e8] sm:$0xf]
    %v401 = vld [vmem:[#allocation4 + $0x3ec] sm:$0xf]
    %v402 = vld [vmem:[#allocation4 + $0x3f0] sm:$0xf]
    %v403 = vld [vmem:[#allocation4 + $0x3f4] sm:$0xf]
    %v404 = vld [vmem:[#allocation4 + $0x3f8] sm:$0xf]
    %v405 = vld [vmem:[#allocation4 + $0x3fc] sm:$0xf]
    %v406 = vld [vmem:[#allocation4 + $0x400] sm:$0xf]
    %v407 = vld [vmem:[#allocation4 + $0x404] sm:$0xf]
    %v408 = vld [vmem:[#allocation4 + $0x408] sm:$0xf]
    %v409 = vld [vmem:[#allocation4 + $0x40c] sm:$0xf]
    %v410 = vld [vmem:[#allocation4 + $0x410] sm:$0xf]
    %v411 = vld [vmem:[#allocation4 + $0x414] sm:$0xf]
    %v412 = vld [vmem:[#allocation4 + $0x418] sm:$0xf]
    %v413 = vld [vmem:[#allocation4 + $0x41c] sm:$0xf]
    %v414 = vld [vmem:[#allocation4 + $0x420] sm:$0xf]
    %v415 = vld [vmem:[#allocation4 + $0x424] sm:$0xf]
    %v416 = vld [vmem:[#allocation4 + $0x428] sm:$0xf]
    %v417 = vld [vmem:[#allocation4 + $0x42c] sm:$0xf]
    %v418 = vld [vmem:[#allocation4 + $0x430] sm:$0xf]
    %v419 = vld [vmem:[#allocation4 + $0x434] sm:$0xf]
    %v420 = vld [vmem:[#allocation4 + $0x438] sm:$0xf]
    %v421 = vld [vmem:[#allocation4 + $0x43c] sm:$0xf]
    %v422 = vld [vmem:[#allocation4 + $0x440] sm:$0xf]
    %v423 = vld [vmem:[#allocation4 + $0x444] sm:$0xf]
    %v424 = vld [vmem:[#allocation4 + $0x448] sm:$0xf]
    %v425 = vld [vmem:[#allocation4 + $0x44c] sm:$0xf]
    %v426 = vld [vmem:[#allocation4 + $0x450] sm:$0xf]
    %v427 = vld [vmem:[#allocation4 + $0x454] sm:$0xf]
    %v428 = vld [vmem:[#allocation4 + $0x458] sm:$0xf]
    %v429 = vld [vmem:[#allocation4 + $0x45c] sm:$0xf]
    %v430 = vld [vmem:[#allocation4 + $0x460] sm:$0xf]
    %v431 = vld [vmem:[#allocation4 + $0x464] sm:$0xf]
    %v432 = vld [vmem:[#allocation4 + $0x468] sm:$0xf]
    %v433 = vld [vmem:[#allocation4 + $0x46c] sm:$0xf]
    %v434 = vld [vmem:[#allocation4 + $0x470] sm:$0xf]
    %v435 = vld [vmem:[#allocation4 + $0x474] sm:$0xf]
    %v436 = vld [vmem:[#allocation4 + $0x478] sm:$0xf]
    %v437 = vld [vmem:[#allocation4 + $0x47c] sm:$0xf]
    %v438 = vld [vmem:[#allocation4 + $0x480] sm:$0xf]
    %v439 = vld [vmem:[#allocation4 + $0x484] sm:$0xf]
    %v440 = vld [vmem:[#allocation4 + $0x488] sm:$0xf]
    %v441 = vld [vmem:[#allocation4 + $0x48c] sm:$0xf]
    %v442 = vld [vmem:[#allocation4 + $0x490] sm:$0xf]
    %v443 = vld [vmem:[#allocation4 + $0x494] sm:$0xf]
    %v444 = vld [vmem:[#allocation4 + $0x498] sm:$0xf]
    %v445 = vld [vmem:[#allocation4 + $0x49c] sm:$0xf]
    %v446 = vld [vmem:[#allocation4 + $0x4a0] sm:$0xf]
    %v447 = vld [vmem:[#allocation4 + $0x4a4] sm:$0xf]
    %v448 = vld [vmem:[#allocation4 + $0x4a8] sm:$0xf]
    %v449 = vld [vmem:[#allocation4 + $0x4ac] sm:$0xf]
    %v450 = vld [vmem:[#allocation4 + $0x4b0] sm:$0xf]
    %v451 = vld [vmem:[#allocation4 + $0x4b4] sm:$0xf]
    %v452 = vld [vmem:[#allocation4 + $0x4b8] sm:$0xf]
    %v453 = vld [vmem:[#allocation4 + $0x4bc] sm:$0xf]
    %v454 = vld [vmem:[#allocation4 + $0x4c0] sm:$0xf]
    %v455 = vld [vmem:[#allocation4 + $0x4c4] sm:$0xf]
    %v456 = vld [vmem:[#allocation4 + $0x4c8] sm:$0xf]
    %v457 = vld [vmem:[#allocation4 + $0x4cc] sm:$0xf]
    %v458 = vld [vmem:[#allocation4 + $0x4d0] sm:$0xf]
    %v459 = vld [vmem:[#allocation4 + $0x4d4] sm:$0xf]
    %v460 = vld [vmem:[#allocation4 + $0x4d8] sm:$0xf]
    %v461 = vld [vmem:[#allocation4 + $0x4dc] sm:$0xf]
    %v462 = vld [vmem:[#allocation4 + $0x4e0] sm:$0x3]
    %v463 = vld [vmem:[%s2] sm:$0x1]
    %v465 = vperm.slane %v463, 0
    %v780 = vunpack.c.l.b16 %v150
    %v781 = vunpack.c.l.b16 %v151
    %v782 = vunpack.c.l.b16 %v152
    %v783 = vunpack.c.l.b16 %v153
    %v784 = vunpack.c.l.b16 %v154
    %v785 = vunpack.c.l.b16 %v155
    %v786 = vunpack.c.l.b16 %v156
    %v787 = vunpack.c.l.b16 %v157
    %v788 = vunpack.c.l.b16 %v158
    %v789 = vunpack.c.l.b16 %v159
    %v790 = vunpack.c.l.b16 %v160
    %v791 = vunpack.c.l.b16 %v161
    %v792 = vunpack.c.l.b16 %v162
    %v793 = vunpack.c.l.b16 %v163
    %v794 = vunpack.c.l.b16 %v164
    %v795 = vunpack.c.l.b16 %v165
    %v796 = vunpack.c.l.b16 %v166
    %v797 = vunpack.c.l.b16 %v167
    %v798 = vunpack.c.l.b16 %v168
    %v799 = vunpack.c.l.b16 %v169
    %v800 = vunpack.c.l.b16 %v170
    %v801 = vunpack.c.l.b16 %v171
    %v802 = vunpack.c.l.b16 %v172
    %v803 = vunpack.c.l.b16 %v173
    %v804 = vunpack.c.l.b16 %v174
    %v805 = vunpack.c.l.b16 %v175
    %v806 = vunpack.c.l.b16 %v176
    %v807 = vunpack.c.l.b16 %v177
    %v808 = vunpack.c.l.b16 %v178
    %v809 = vunpack.c.l.b16 %v179
    %v810 = vunpack.c.l.b16 %v180
    %v811 = vunpack.c.l.b16 %v181
    %v812 = vunpack.c.l.b16 %v182
    %v813 = vunpack.c.l.b16 %v183
    %v814 = vunpack.c.l.b16 %v184
    %v815 = vunpack.c.l.b16 %v185
    %v816 = vunpack.c.l.b16 %v186
    %v817 = vunpack.c.l.b16 %v187
    %v818 = vunpack.c.l.b16 %v188
    %v819 = vunpack.c.l.b16 %v189
    %v820 = vunpack.c.l.b16 %v190
    %v821 = vunpack.c.l.b16 %v191
    %v822 = vunpack.c.l.b16 %v192
    %v823 = vunpack.c.l.b16 %v193
    %v824 = vunpack.c.l.b16 %v194
    %v825 = vunpack.c.l.b16 %v195
    %v826 = vunpack.c.l.b16 %v196
    %v827 = vunpack.c.l.b16 %v197
    %v828 = vunpack.c.l.b16 %v198
    %v829 = vunpack.c.l.b16 %v199
    %v830 = vunpack.c.l.b16 %v200
    %v831 = vunpack.c.l.b16 %v201
    %v832 = vunpack.c.l.b16 %v202
    %v833 = vunpack.c.l.b16 %v203
    %v834 = vunpack.c.l.b16 %v204
    %v835 = vunpack.c.l.b16 %v205
    %v836 = vunpack.c.l.b16 %v206
    %v837 = vunpack.c.l.b16 %v207
    %v838 = vunpack.c.l.b16 %v208
    %v839 = vunpack.c.l.b16 %v209
    %v840 = vunpack.c.l.b16 %v210
    %v841 = vunpack.c.l.b16 %v211
    %v842 = vunpack.c.l.b16 %v212
    %v843 = vunpack.c.l.b16 %v213
    %v844 = vunpack.c.l.b16 %v214
    %v845 = vunpack.c.l.b16 %v215
    %v846 = vunpack.c.l.b16 %v216
    %v847 = vunpack.c.l.b16 %v217
    %v848 = vunpack.c.l.b16 %v218
    %v849 = vunpack.c.l.b16 %v219
    %v850 = vunpack.c.l.b16 %v220
    %v851 = vunpack.c.l.b16 %v221
    %v852 = vunpack.c.l.b16 %v222
    %v853 = vunpack.c.l.b16 %v223
    %v854 = vunpack.c.l.b16 %v224
    %v855 = vunpack.c.l.b16 %v225
    %v856 = vunpack.c.l.b16 %v226
    %v857 = vunpack.c.l.b16 %v227
    %v858 = vunpack.c.l.b16 %v228
    %v859 = vunpack.c.l.b16 %v229
    %v860 = vunpack.c.l.b16 %v230
    %v861 = vunpack.c.l.b16 %v231
    %v862 = vunpack.c.l.b16 %v232
    %v863 = vunpack.c.l.b16 %v233
    %v864 = vunpack.c.l.b16 %v234
    %v865 = vunpack.c.l.b16 %v235
    %v866 = vunpack.c.l.b16 %v236
    %v867 = vunpack.c.l.b16 %v237
    %v868 = vunpack.c.l.b16 %v238
    %v869 = vunpack.c.l.b16 %v239
    %v870 = vunpack.c.l.b16 %v240
    %v871 = vunpack.c.l.b16 %v241
    %v872 = vunpack.c.l.b16 %v242
    %v873 = vunpack.c.l.b16 %v243
    %v874 = vunpack.c.l.b16 %v244
    %v875 = vunpack.c.l.b16 %v245
    %v876 = vunpack.c.l.b16 %v246
    %v877 = vunpack.c.l.b16 %v247
    %v878 = vunpack.c.l.b16 %v248
    %v879 = vunpack.c.l.b16 %v249
    %v880 = vunpack.c.l.b16 %v250
    %v881 = vunpack.c.l.b16 %v251
    %v882 = vunpack.c.l.b16 %v252
    %v883 = vunpack.c.l.b16 %v253
    %v884 = vunpack.c.l.b16 %v254
    %v885 = vunpack.c.l.b16 %v255
    %v886 = vunpack.c.l.b16 %v256
    %v887 = vunpack.c.l.b16 %v257
    %v888 = vunpack.c.l.b16 %v258
    %v889 = vunpack.c.l.b16 %v259
    %v890 = vunpack.c.l.b16 %v260
    %v891 = vunpack.c.l.b16 %v261
    %v892 = vunpack.c.l.b16 %v262
    %v893 = vunpack.c.l.b16 %v263
    %v894 = vunpack.c.l.b16 %v264
    %v895 = vunpack.c.l.b16 %v265
    %v896 = vunpack.c.l.b16 %v266
    %v897 = vunpack.c.l.b16 %v267
    %v898 = vunpack.c.l.b16 %v268
    %v899 = vunpack.c.l.b16 %v269
    %v900 = vunpack.c.l.b16 %v270
    %v901 = vunpack.c.l.b16 %v271
    %v902 = vunpack.c.l.b16 %v272
    %v903 = vunpack.c.l.b16 %v273
    %v904 = vunpack.c.l.b16 %v274
    %v905 = vunpack.c.l.b16 %v275
    %v906 = vunpack.c.l.b16 %v276
    %v907 = vunpack.c.l.b16 %v277
    %v908 = vunpack.c.l.b16 %v278
    %v909 = vunpack.c.l.b16 %v279
    %v910 = vunpack.c.l.b16 %v280
    %v911 = vunpack.c.l.b16 %v281
    %v912 = vunpack.c.l.b16 %v282
    %v913 = vunpack.c.l.b16 %v283
    %v914 = vunpack.c.l.b16 %v284
    %v915 = vunpack.c.l.b16 %v285
    %v916 = vunpack.c.l.b16 %v286
    %v917 = vunpack.c.l.b16 %v287
    %v918 = vunpack.c.l.b16 %v288
    %v919 = vunpack.c.l.b16 %v289
    %v920 = vunpack.c.l.b16 %v290
    %v921 = vunpack.c.l.b16 %v291
    %v922 = vunpack.c.l.b16 %v292
    %v923 = vunpack.c.l.b16 %v293
    %v924 = vunpack.c.l.b16 %v294
    %v925 = vunpack.c.l.b16 %v295
    %v926 = vunpack.c.l.b16 %v296
    %v927 = vunpack.c.l.b16 %v297
    %v928 = vunpack.c.l.b16 %v298
    %v929 = vunpack.c.l.b16 %v299
    %v930 = vunpack.c.l.b16 %v300
    %v931 = vunpack.c.l.b16 %v301
    %v932 = vunpack.c.l.b16 %v302
    %v933 = vunpack.c.l.b16 %v303
    %v934 = vunpack.c.l.b16 %v304
    %v935 = vunpack.c.l.b16 %v305
    %v936 = vunpack.c.l.b16 %v306
    %v937 = vunpack.c.l.b16 %v307
    %v938 = vunpack.c.l.b16 %v308
    %v939 = vunpack.c.l.b16 %v309
    %v940 = vunpack.c.l.b16 %v310
    %v941 = vunpack.c.l.b16 %v311
    %v942 = vunpack.c.l.b16 %v312
    %v943 = vunpack.c.l.b16 %v313
    %v944 = vunpack.c.l.b16 %v314
    %v945 = vunpack.c.l.b16 %v315
    %v946 = vunpack.c.l.b16 %v316
    %v947 = vunpack.c.l.b16 %v317
    %v948 = vunpack.c.l.b16 %v318
    %v949 = vunpack.c.l.b16 %v319
    %v950 = vunpack.c.l.b16 %v320
    %v951 = vunpack.c.l.b16 %v321
    %v952 = vunpack.c.l.b16 %v322
    %v953 = vunpack.c.l.b16 %v323
    %v954 = vunpack.c.l.b16 %v324
    %v955 = vunpack.c.l.b16 %v325
    %v956 = vunpack.c.l.b16 %v326
    %v957 = vunpack.c.l.b16 %v327
    %v958 = vunpack.c.l.b16 %v328
    %v959 = vunpack.c.l.b16 %v329
    %v960 = vunpack.c.l.b16 %v330
    %v961 = vunpack.c.l.b16 %v331
    %v962 = vunpack.c.l.b16 %v332
    %v963 = vunpack.c.l.b16 %v333
    %v964 = vunpack.c.l.b16 %v334
    %v965 = vunpack.c.l.b16 %v335
    %v966 = vunpack.c.l.b16 %v336
    %v967 = vunpack.c.l.b16 %v337
    %v968 = vunpack.c.l.b16 %v338
    %v969 = vunpack.c.l.b16 %v339
    %v970 = vunpack.c.l.b16 %v340
    %v971 = vunpack.c.l.b16 %v341
    %v972 = vunpack.c.l.b16 %v342
    %v973 = vunpack.c.l.b16 %v343
    %v974 = vunpack.c.l.b16 %v344
    %v975 = vunpack.c.l.b16 %v345
    %v976 = vunpack.c.l.b16 %v346
    %v977 = vunpack.c.l.b16 %v347
    %v978 = vunpack.c.l.b16 %v348
    %v979 = vunpack.c.l.b16 %v349
    %v980 = vunpack.c.l.b16 %v350
    %v981 = vunpack.c.l.b16 %v351
    %v982 = vunpack.c.l.b16 %v352
    %v983 = vunpack.c.l.b16 %v353
    %v984 = vunpack.c.l.b16 %v354
    %v985 = vunpack.c.l.b16 %v355
    %v986 = vunpack.c.l.b16 %v356
    %v987 = vunpack.c.l.b16 %v357
    %v988 = vunpack.c.l.b16 %v358
    %v989 = vunpack.c.l.b16 %v359
    %v990 = vunpack.c.l.b16 %v360
    %v991 = vunpack.c.l.b16 %v361
    %v992 = vunpack.c.l.b16 %v362
    %v993 = vunpack.c.l.b16 %v363
    %v994 = vunpack.c.l.b16 %v364
    %v995 = vunpack.c.l.b16 %v365
    %v996 = vunpack.c.l.b16 %v366
    %v997 = vunpack.c.l.b16 %v367
    %v998 = vunpack.c.l.b16 %v368
    %v999 = vunpack.c.l.b16 %v369
    %v1000 = vunpack.c.l.b16 %v370
    %v1001 = vunpack.c.l.b16 %v371
    %v1002 = vunpack.c.l.b16 %v372
    %v1003 = vunpack.c.l.b16 %v373
    %v1004 = vunpack.c.l.b16 %v374
    %v1005 = vunpack.c.l.b16 %v375
    %v1006 = vunpack.c.l.b16 %v376
    %v1007 = vunpack.c.l.b16 %v377
    %v1008 = vunpack.c.l.b16 %v378
    %v1009 = vunpack.c.l.b16 %v379
    %v1010 = vunpack.c.l.b16 %v380
    %v1011 = vunpack.c.l.b16 %v381
    %v1012 = vunpack.c.l.b16 %v382
    %v1013 = vunpack.c.l.b16 %v383
    %v1014 = vunpack.c.l.b16 %v384
    %v1015 = vunpack.c.l.b16 %v385
    %v1016 = vunpack.c.l.b16 %v386
    %v1017 = vunpack.c.l.b16 %v387
    %v1018 = vunpack.c.l.b16 %v388
    %v1019 = vunpack.c.l.b16 %v389
    %v1020 = vunpack.c.l.b16 %v390
    %v1021 = vunpack.c.l.b16 %v391
    %v1022 = vunpack.c.l.b16 %v392
    %v1023 = vunpack.c.l.b16 %v393
    %v1024 = vunpack.c.l.b16 %v394
    %v1025 = vunpack.c.l.b16 %v395
    %v1026 = vunpack.c.l.b16 %v396
    %v1027 = vunpack.c.l.b16 %v397
    %v1028 = vunpack.c.l.b16 %v398
    %v1029 = vunpack.c.l.b16 %v399
    %v1030 = vunpack.c.l.b16 %v400
    %v1031 = vunpack.c.l.b16 %v401
    %v1032 = vunpack.c.l.b16 %v402
    %v1033 = vunpack.c.l.b16 %v403
    %v1034 = vunpack.c.l.b16 %v404
    %v1035 = vunpack.c.l.b16 %v405
    %v1036 = vunpack.c.l.b16 %v406
    %v1037 = vunpack.c.l.b16 %v407
    %v1038 = vunpack.c.l.b16 %v408
    %v1039 = vunpack.c.l.b16 %v409
    %v1040 = vunpack.c.l.b16 %v410
    %v1041 = vunpack.c.l.b16 %v411
    %v1042 = vunpack.c.l.b16 %v412
    %v1043 = vunpack.c.l.b16 %v413
    %v1044 = vunpack.c.l.b16 %v414
    %v1045 = vunpack.c.l.b16 %v415
    %v1046 = vunpack.c.l.b16 %v416
    %v1047 = vunpack.c.l.b16 %v417
    %v1048 = vunpack.c.l.b16 %v418
    %v1049 = vunpack.c.l.b16 %v419
    %v1050 = vunpack.c.l.b16 %v420
    %v1051 = vunpack.c.l.b16 %v421
    %v1052 = vunpack.c.l.b16 %v422
    %v1053 = vunpack.c.l.b16 %v423
    %v1054 = vunpack.c.l.b16 %v424
    %v1055 = vunpack.c.l.b16 %v425
    %v1056 = vunpack.c.l.b16 %v426
    %v1057 = vunpack.c.l.b16 %v427
    %v1058 = vunpack.c.l.b16 %v428
    %v1059 = vunpack.c.l.b16 %v429
    %v1060 = vunpack.c.l.b16 %v430
    %v1061 = vunpack.c.l.b16 %v431
    %v1062 = vunpack.c.l.b16 %v432
    %v1063 = vunpack.c.l.b16 %v433
    %v1064 = vunpack.c.l.b16 %v434
    %v1065 = vunpack.c.l.b16 %v435
    %v1066 = vunpack.c.l.b16 %v436
    %v1067 = vunpack.c.l.b16 %v437
    %v1068 = vunpack.c.l.b16 %v438
    %v1069 = vunpack.c.l.b16 %v439
    %v1070 = vunpack.c.l.b16 %v440
    %v1071 = vunpack.c.l.b16 %v441
    %v1072 = vunpack.c.l.b16 %v442
    %v1073 = vunpack.c.l.b16 %v443
    %v1074 = vunpack.c.l.b16 %v444
    %v1075 = vunpack.c.l.b16 %v445
    %v1076 = vunpack.c.l.b16 %v446
    %v1077 = vunpack.c.l.b16 %v447
    %v1078 = vunpack.c.l.b16 %v448
    %v1079 = vunpack.c.l.b16 %v449
    %v1080 = vunpack.c.l.b16 %v450
    %v1081 = vunpack.c.l.b16 %v451
    %v1082 = vunpack.c.l.b16 %v452
    %v1083 = vunpack.c.l.b16 %v453
    %v1084 = vunpack.c.l.b16 %v454
    %v1085 = vunpack.c.l.b16 %v455
    %v1086 = vunpack.c.l.b16 %v456
    %v1087 = vunpack.c.l.b16 %v457
    %v1088 = vunpack.c.l.b16 %v458
    %v1089 = vunpack.c.l.b16 %v459
    %v1090 = vunpack.c.l.b16 %v460
    %v1091 = vunpack.c.l.b16 %v461
    %v1092 = vunpack.c.l.b16 %v462
    %v1093 = vpack.c.b16 %v781, %v780
    %v1094 = vpack.c.b16 %v783, %v782
    %v1095 = vpack.c.b16 %v785, %v784
    %v1096 = vpack.c.b16 %v787, %v786
    %v1097 = vpack.c.b16 %v789, %v788
    %v1098 = vpack.c.b16 %v791, %v790
    %v1099 = vpack.c.b16 %v793, %v792
    %v1100 = vpack.c.b16 %v795, %v794
    %v1101 = vpack.c.b16 %v797, %v796
    %v1102 = vpack.c.b16 %v799, %v798
    %v1103 = vpack.c.b16 %v801, %v800
    %v1104 = vpack.c.b16 %v803, %v802
    %v1105 = vpack.c.b16 %v805, %v804
    %v1106 = vpack.c.b16 %v807, %v806
    %v1107 = vpack.c.b16 %v809, %v808
    %v1108 = vpack.c.b16 %v811, %v810
    %v1109 = vpack.c.b16 %v813, %v812
    %v1110 = vpack.c.b16 %v815, %v814
    %v1111 = vpack.c.b16 %v817, %v816
    %v1112 = vpack.c.b16 %v819, %v818
    %v1113 = vpack.c.b16 %v821, %v820
    %v1114 = vpack.c.b16 %v823, %v822
    %v1115 = vpack.c.b16 %v825, %v824
    %v1116 = vpack.c.b16 %v827, %v826
    %v1117 = vpack.c.b16 %v829, %v828
    %v1118 = vpack.c.b16 %v831, %v830
    %v1119 = vpack.c.b16 %v833, %v832
    %v1120 = vpack.c.b16 %v835, %v834
    %v1121 = vpack.c.b16 %v837, %v836
    %v1122 = vpack.c.b16 %v839, %v838
    %v1123 = vpack.c.b16 %v841, %v840
    %v1124 = vpack.c.b16 %v843, %v842
    %v1125 = vpack.c.b16 %v845, %v844
    %v1126 = vpack.c.b16 %v847, %v846
    %v1127 = vpack.c.b16 %v849, %v848
    %v1128 = vpack.c.b16 %v851, %v850
    %v1129 = vpack.c.b16 %v853, %v852
    %v1130 = vpack.c.b16 %v855, %v854
    %v1131 = vpack.c.b16 %v857, %v856
    %v1132 = vpack.c.b16 %v859, %v858
    %v1133 = vpack.c.b16 %v861, %v860
    %v1134 = vpack.c.b16 %v863, %v862
    %v1135 = vpack.c.b16 %v865, %v864
    %v1136 = vpack.c.b16 %v867, %v866
    %v1137 = vpack.c.b16 %v869, %v868
    %v1138 = vpack.c.b16 %v871, %v870
    %v1139 = vpack.c.b16 %v873, %v872
    %v1140 = vpack.c.b16 %v875, %v874
    %v1141 = vpack.c.b16 %v877, %v876
    %v1142 = vpack.c.b16 %v879, %v878
    %v1143 = vpack.c.b16 %v881, %v880
    %v1144 = vpack.c.b16 %v883, %v882
    %v1145 = vpack.c.b16 %v885, %v884
    %v1146 = vpack.c.b16 %v887, %v886
    %v1147 = vpack.c.b16 %v889, %v888
    %v1148 = vpack.c.b16 %v891, %v890
    %v1149 = vpack.c.b16 %v893, %v892
    %v1150 = vpack.c.b16 %v895, %v894
    %v1151 = vpack.c.b16 %v897, %v896
    %v1152 = vpack.c.b16 %v899, %v898
    %v1153 = vpack.c.b16 %v901, %v900
    %v1154 = vpack.c.b16 %v903, %v902
    %v1155 = vpack.c.b16 %v905, %v904
    %v1156 = vpack.c.b16 %v907, %v906
    %v1157 = vpack.c.b16 %v909, %v908
    %v1158 = vpack.c.b16 %v911, %v910
    %v1159 = vpack.c.b16 %v913, %v912
    %v1160 = vpack.c.b16 %v915, %v914
    %v1161 = vpack.c.b16 %v917, %v916
    %v1162 = vpack.c.b16 %v919, %v918
    %v1163 = vpack.c.b16 %v921, %v920
    %v1164 = vpack.c.b16 %v923, %v922
    %v1165 = vpack.c.b16 %v925, %v924
    %v1166 = vpack.c.b16 %v927, %v926
    %v1167 = vpack.c.b16 %v929, %v928
    %v1168 = vpack.c.b16 %v931, %v930
    %v1169 = vpack.c.b16 %v933, %v932
    %v1170 = vpack.c.b16 %v935, %v934
    %v1171 = vpack.c.b16 %v937, %v936
    %v1172 = vpack.c.b16 %v939, %v938
    %v1173 = vpack.c.b16 %v941, %v940
    %v1174 = vpack.c.b16 %v943, %v942
    %v1175 = vpack.c.b16 %v945, %v944
    %v1176 = vpack.c.b16 %v947, %v946
    %v1177 = vpack.c.b16 %v949, %v948
    %v1178 = vpack.c.b16 %v951, %v950
    %v1179 = vpack.c.b16 %v953, %v952
    %v1180 = vpack.c.b16 %v955, %v954
    %v1181 = vpack.c.b16 %v957, %v956
    %v1182 = vpack.c.b16 %v959, %v958
    %v1183 = vpack.c.b16 %v961, %v960
    %v1184 = vpack.c.b16 %v963, %v962
    %v1185 = vpack.c.b16 %v965, %v964
    %v1186 = vpack.c.b16 %v967, %v966
    %v1187 = vpack.c.b16 %v969, %v968
    %v1188 = vpack.c.b16 %v971, %v970
    %v1189 = vpack.c.b16 %v973, %v972
    %v1190 = vpack.c.b16 %v975, %v974
    %v1191 = vpack.c.b16 %v977, %v976
    %v1192 = vpack.c.b16 %v979, %v978
    %v1193 = vpack.c.b16 %v981, %v980
    %v1194 = vpack.c.b16 %v983, %v982
    %v1195 = vpack.c.b16 %v985, %v984
    %v1196 = vpack.c.b16 %v987, %v986
    %v1197 = vpack.c.b16 %v989, %v988
    %v1198 = vpack.c.b16 %v991, %v990
    %v1199 = vpack.c.b16 %v993, %v992
    %v1200 = vpack.c.b16 %v995, %v994
    %v1201 = vpack.c.b16 %v997, %v996
    %v1202 = vpack.c.b16 %v999, %v998
    %v1203 = vpack.c.b16 %v1001, %v1000
    %v1204 = vpack.c.b16 %v1003, %v1002
    %v1205 = vpack.c.b16 %v1005, %v1004
    %v1206 = vpack.c.b16 %v1007, %v1006
    %v1207 = vpack.c.b16 %v1009, %v1008
    %v1208 = vpack.c.b16 %v1011, %v1010
    %v1209 = vpack.c.b16 %v1013, %v1012
    %v1210 = vpack.c.b16 %v1015, %v1014
    %v1211 = vpack.c.b16 %v1017, %v1016
    %v1212 = vpack.c.b16 %v1019, %v1018
    %v1213 = vpack.c.b16 %v1021, %v1020
    %v1214 = vpack.c.b16 %v1023, %v1022
    %v1215 = vpack.c.b16 %v1025, %v1024
    %v1216 = vpack.c.b16 %v1027, %v1026
    %v1217 = vpack.c.b16 %v1029, %v1028
    %v1218 = vpack.c.b16 %v1031, %v1030
    %v1219 = vpack.c.b16 %v1033, %v1032
    %v1220 = vpack.c.b16 %v1035, %v1034
    %v1221 = vpack.c.b16 %v1037, %v1036
    %v1222 = vpack.c.b16 %v1039, %v1038
    %v1223 = vpack.c.b16 %v1041, %v1040
    %v1224 = vpack.c.b16 %v1043, %v1042
    %v1225 = vpack.c.b16 %v1045, %v1044
    %v1226 = vpack.c.b16 %v1047, %v1046
    %v1227 = vpack.c.b16 %v1049, %v1048
    %v1228 = vpack.c.b16 %v1051, %v1050
    %v1229 = vpack.c.b16 %v1053, %v1052
    %v1230 = vpack.c.b16 %v1055, %v1054
    %v1231 = vpack.c.b16 %v1057, %v1056
    %v1232 = vpack.c.b16 %v1059, %v1058
    %v1233 = vpack.c.b16 %v1061, %v1060
    %v1234 = vpack.c.b16 %v1063, %v1062
    %v1235 = vpack.c.b16 %v1065, %v1064
    %v1236 = vpack.c.b16 %v1067, %v1066
    %v1237 = vpack.c.b16 %v1069, %v1068
    %v1238 = vpack.c.b16 %v1071, %v1070
    %v1239 = vpack.c.b16 %v1073, %v1072
    %v1240 = vpack.c.b16 %v1075, %v1074
    %v1241 = vpack.c.b16 %v1077, %v1076
    %v1242 = vpack.c.b16 %v1079, %v1078
    %v1243 = vpack.c.b16 %v1081, %v1080
    %v1244 = vpack.c.b16 %v1083, %v1082
    %v1245 = vpack.c.b16 %v1085, %v1084
    %v1246 = vpack.c.b16 %v1087, %v1086
    %v1247 = vpack.c.b16 %v1089, %v1088
    %v1248 = vpack.c.b16 %v1091, %v1090
    %v1249 = vpack.c.b16 %v1092, %v1092
    %vm1406 = vcmask 556032
    %v1408 = vsel %vm1406, %v149, 0
    %vm1410 = vcmask 1041408
    %v1412 = vsel %vm1410, %v1249, 0
    %1414 = vmatpush.bf16.msra.mxu0 %v1100
    %1415 = vmatpush.bf16.msra.mxu0 %v1099
    %1416 = vmatpush.bf16.msra.mxu0 %v1098
    %1417 = vmatpush.bf16.msra.mxu0 %v1097
    %1418 = vmatpush.bf16.msra.mxu0 %v1096
    %1419 = vmatpush.bf16.msra.mxu0 %v1095
    %1420 = vmatpush.bf16.msra.mxu0 %v1094
    %1421 = vmatpush.bf16.msra.mxu0 %v1093
    %1422 = vmatmul.bf16.gmra.mxu0 %v130
    %v1423 = vpop.f32.mrf.mxu0
    %v1424 = vadd.f32 %v465, %v1423
    %v1425 = vpop.f32.mrf.mxu0
    %v1426 = vadd.f32 %v465, %v1425
    %1427 = vdwg.mxu0
    %1428 = vmatpush.bf16.msra.mxu0 %v1108
    %1429 = vmatpush.bf16.msra.mxu0 %v1107
    %1430 = vmatpush.bf16.msra.mxu0 %v1106
    %1431 = vmatpush.bf16.msra.mxu0 %v1105
    %1432 = vmatpush.bf16.msra.mxu0 %v1104
    %1433 = vmatpush.bf16.msra.mxu0 %v1103
    %1434 = vmatpush.bf16.msra.mxu0 %v1102
    %1435 = vmatpush.bf16.msra.mxu0 %v1101
    %1436 = vmatmul.bf16.gmra.mxu0 %v131
    %v1437 = vpop.f32.mrf.mxu0
    %v1438 = vadd.f32 %v1424, %v1437
    %v1439 = vpop.f32.mrf.mxu0
    %v1440 = vadd.f32 %v1426, %v1439
    %1441 = vdwg.mxu0
    %1442 = vmatpush.bf16.msra.mxu0 %v1116
    %1443 = vmatpush.bf16.msra.mxu0 %v1115
    %1444 = vmatpush.bf16.msra.mxu0 %v1114
    %1445 = vmatpush.bf16.msra.mxu0 %v1113
    %1446 = vmatpush.bf16.msra.mxu0 %v1112
    %1447 = vmatpush.bf16.msra.mxu0 %v1111
    %1448 = vmatpush.bf16.msra.mxu0 %v1110
    %1449 = vmatpush.bf16.msra.mxu0 %v1109
    %1450 = vmatmul.bf16.gmra.mxu0 %v132
    %v1451 = vpop.f32.mrf.mxu0
    %v1452 = vadd.f32 %v1438, %v1451
    %v1453 = vpop.f32.mrf.mxu0
    %v1454 = vadd.f32 %v1440, %v1453
    %1455 = vdwg.mxu0
    %1456 = vmatpush.bf16.msra.mxu0 %v1124
    %1457 = vmatpush.bf16.msra.mxu0 %v1123
    %1458 = vmatpush.bf16.msra.mxu0 %v1122
    %1459 = vmatpush.bf16.msra.mxu0 %v1121
    %1460 = vmatpush.bf16.msra.mxu0 %v1120
    %1461 = vmatpush.bf16.msra.mxu0 %v1119
    %1462 = vmatpush.bf16.msra.mxu0 %v1118
    %1463 = vmatpush.bf16.msra.mxu0 %v1117
    %1464 = vmatmul.bf16.gmra.mxu0 %v133
    %v1465 = vpop.f32.mrf.mxu0
    %v1466 = vadd.f32 %v1452, %v1465
    %v1467 = vpop.f32.mrf.mxu0
    %v1468 = vadd.f32 %v1454, %v1467
    %1469 = vdwg.mxu0
    %1470 = vmatpush.bf16.msra.mxu0 %v1132
    %1471 = vmatpush.bf16.msra.mxu0 %v1131
    %1472 = vmatpush.bf16.msra.mxu0 %v1130
    %1473 = vmatpush.bf16.msra.mxu0 %v1129
    %1474 = vmatpush.bf16.msra.mxu0 %v1128
    %1475 = vmatpush.bf16.msra.mxu0 %v1127
    %1476 = vmatpush.bf16.msra.mxu0 %v1126
    %1477 = vmatpush.bf16.msra.mxu0 %v1125
    %1478 = vmatmul.bf16.gmra.mxu0 %v134
    %v1479 = vpop.f32.mrf.mxu0
    %v1480 = vadd.f32 %v1466, %v1479
    %v1481 = vpop.f32.mrf.mxu0
    %v1482 = vadd.f32 %v1468, %v1481
    %1483 = vdwg.mxu0
    %1484 = vmatpush.bf16.msra.mxu0 %v1140
    %1485 = vmatpush.bf16.msra.mxu0 %v1139
    %1486 = vmatpush.bf16.msra.mxu0 %v1138
    %1487 = vmatpush.bf16.msra.mxu0 %v1137
    %1488 = vmatpush.bf16.msra.mxu0 %v1136
    %1489 = vmatpush.bf16.msra.mxu0 %v1135
    %1490 = vmatpush.bf16.msra.mxu0 %v1134
    %1491 = vmatpush.bf16.msra.mxu0 %v1133
    %1492 = vmatmul.bf16.gmra.mxu0 %v135
    %v1493 = vpop.f32.mrf.mxu0
    %v1494 = vadd.f32 %v1480, %v1493
    %v1495 = vpop.f32.mrf.mxu0
    %v1496 = vadd.f32 %v1482, %v1495
    %1497 = vdwg.mxu0
    %1498 = vmatpush.bf16.msra.mxu0 %v1148
    %1499 = vmatpush.bf16.msra.mxu0 %v1147
    %1500 = vmatpush.bf16.msra.mxu0 %v1146
    %1501 = vmatpush.bf16.msra.mxu0 %v1145
    %1502 = vmatpush.bf16.msra.mxu0 %v1144
    %1503 = vmatpush.bf16.msra.mxu0 %v1143
    %1504 = vmatpush.bf16.msra.mxu0 %v1142
    %1505 = vmatpush.bf16.msra.mxu0 %v1141
    %1506 = vmatmul.bf16.gmra.mxu0 %v136
    %v1507 = vpop.f32.mrf.mxu0
    %v1508 = vadd.f32 %v1494, %v1507
    %v1509 = vpop.f32.mrf.mxu0
    %v1510 = vadd.f32 %v1496, %v1509
    %1511 = vdwg.mxu0
    %1512 = vmatpush.bf16.msra.mxu0 %v1156
    %1513 = vmatpush.bf16.msra.mxu0 %v1155
    %1514 = vmatpush.bf16.msra.mxu0 %v1154
    %1515 = vmatpush.bf16.msra.mxu0 %v1153
    %1516 = vmatpush.bf16.msra.mxu0 %v1152
    %1517 = vmatpush.bf16.msra.mxu0 %v1151
    %1518 = vmatpush.bf16.msra.mxu0 %v1150
    %1519 = vmatpush.bf16.msra.mxu0 %v1149
    %1520 = vmatmul.bf16.gmra.mxu0 %v137
    %v1521 = vpop.f32.mrf.mxu0
    %v1522 = vadd.f32 %v1508, %v1521
    %v1523 = vpop.f32.mrf.mxu0
    %v1524 = vadd.f32 %v1510, %v1523
    %1525 = vdwg.mxu0
    %1526 = vmatpush.bf16.msra.mxu0 %v1164
    %1527 = vmatpush.bf16.msra.mxu0 %v1163
    %1528 = vmatpush.bf16.msra.mxu0 %v1162
    %1529 = vmatpush.bf16.msra.mxu0 %v1161
    %1530 = vmatpush.bf16.msra.mxu0 %v1160
    %1531 = vmatpush.bf16.msra.mxu0 %v1159
    %1532 = vmatpush.bf16.msra.mxu0 %v1158
    %1533 = vmatpush.bf16.msra.mxu0 %v1157
    %1534 = vmatmul.bf16.gmra.mxu0 %v138
    %v1535 = vpop.f32.mrf.mxu0
    %v1536 = vadd.f32 %v1522, %v1535
    %v1537 = vpop.f32.mrf.mxu0
    %v1538 = vadd.f32 %v1524, %v1537
    %1539 = vdwg.mxu0
    %1540 = vmatpush.bf16.msra.mxu0 %v1172
    %1541 = vmatpush.bf16.msra.mxu0 %v1171
    %1542 = vmatpush.bf16.msra.mxu0 %v1170
    %1543 = vmatpush.bf16.msra.mxu0 %v1169
    %1544 = vmatpush.bf16.msra.mxu0 %v1168
    %1545 = vmatpush.bf16.msra.mxu0 %v1167
    %1546 = vmatpush.bf16.msra.mxu0 %v1166
    %1547 = vmatpush.bf16.msra.mxu0 %v1165
    %1548 = vmatmul.bf16.gmra.mxu0 %v139
    %v1549 = vpop.f32.mrf.mxu0
    %v1550 = vadd.f32 %v1536, %v1549
    %v1551 = vpop.f32.mrf.mxu0
    %v1552 = vadd.f32 %v1538, %v1551
    %1553 = vdwg.mxu0
    %1554 = vmatpush.bf16.msra.mxu0 %v1180
    %1555 = vmatpush.bf16.msra.mxu0 %v1179
    %1556 = vmatpush.bf16.msra.mxu0 %v1178
    %1557 = vmatpush.bf16.msra.mxu0 %v1177
    %1558 = vmatpush.bf16.msra.mxu0 %v1176
    %1559 = vmatpush.bf16.msra.mxu0 %v1175
    %1560 = vmatpush.bf16.msra.mxu0 %v1174
    %1561 = vmatpush.bf16.msra.mxu0 %v1173
    %1562 = vmatmul.bf16.gmra.mxu0 %v140
    %v1563 = vpop.f32.mrf.mxu0
    %v1564 = vadd.f32 %v1550, %v1563
    %v1565 = vpop.f32.mrf.mxu0
    %v1566 = vadd.f32 %v1552, %v1565
    %1567 = vdwg.mxu0
    %1568 = vmatpush.bf16.msra.mxu0 %v1188
    %1569 = vmatpush.bf16.msra.mxu0 %v1187
    %1570 = vmatpush.bf16.msra.mxu0 %v1186
    %1571 = vmatpush.bf16.msra.mxu0 %v1185
    %1572 = vmatpush.bf16.msra.mxu0 %v1184
    %1573 = vmatpush.bf16.msra.mxu0 %v1183
    %1574 = vmatpush.bf16.msra.mxu0 %v1182
    %1575 = vmatpush.bf16.msra.mxu0 %v1181
    %1576 = vmatmul.bf16.gmra.mxu0 %v141
    %v1577 = vpop.f32.mrf.mxu0
    %v1578 = vadd.f32 %v1564, %v1577
    %v1579 = vpop.f32.mrf.mxu0
    %v1580 = vadd.f32 %v1566, %v1579
    %1581 = vdwg.mxu0
    %1582 = vmatpush.bf16.msra.mxu0 %v1196
    %1583 = vmatpush.bf16.msra.mxu0 %v1195
    %1584 = vmatpush.bf16.msra.mxu0 %v1194
    %1585 = vmatpush.bf16.msra.mxu0 %v1193
    %1586 = vmatpush.bf16.msra.mxu0 %v1192
    %1587 = vmatpush.bf16.msra.mxu0 %v1191
    %1588 = vmatpush.bf16.msra.mxu0 %v1190
    %1589 = vmatpush.bf16.msra.mxu0 %v1189
    %1590 = vmatmul.bf16.gmra.mxu0 %v142
    %v1591 = vpop.f32.mrf.mxu0
    %v1592 = vadd.f32 %v1578, %v1591
    %v1593 = vpop.f32.mrf.mxu0
    %v1594 = vadd.f32 %v1580, %v1593
    %1595 = vdwg.mxu0
    %1596 = vmatpush.bf16.msra.mxu0 %v1204
    %1597 = vmatpush.bf16.msra.mxu0 %v1203
    %1598 = vmatpush.bf16.msra.mxu0 %v1202
    %1599 = vmatpush.bf16.msra.mxu0 %v1201
    %1600 = vmatpush.bf16.msra.mxu0 %v1200
    %1601 = vmatpush.bf16.msra.mxu0 %v1199
    %1602 = vmatpush.bf16.msra.mxu0 %v1198
    %1603 = vmatpush.bf16.msra.mxu0 %v1197
    %1604 = vmatmul.bf16.gmra.mxu0 %v143
    %v1605 = vpop.f32.mrf.mxu0
    %v1606 = vadd.f32 %v1592, %v1605
    %v1607 = vpop.f32.mrf.mxu0
    %v1608 = vadd.f32 %v1594, %v1607
    %1609 = vdwg.mxu0
    %1610 = vmatpush.bf16.msra.mxu0 %v1212
    %1611 = vmatpush.bf16.msra.mxu0 %v1211
    %1612 = vmatpush.bf16.msra.mxu0 %v1210
    %1613 = vmatpush.bf16.msra.mxu0 %v1209
    %1614 = vmatpush.bf16.msra.mxu0 %v1208
    %1615 = vmatpush.bf16.msra.mxu0 %v1207
    %1616 = vmatpush.bf16.msra.mxu0 %v1206
    %1617 = vmatpush.bf16.msra.mxu0 %v1205
    %1618 = vmatmul.bf16.gmra.mxu0 %v144
    %v1619 = vpop.f32.mrf.mxu0
    %v1620 = vadd.f32 %v1606, %v1619
    %v1621 = vpop.f32.mrf.mxu0
    %v1622 = vadd.f32 %v1608, %v1621
    %1623 = vdwg.mxu0
    %1624 = vmatpush.bf16.msra.mxu0 %v1220
    %1625 = vmatpush.bf16.msra.mxu0 %v1219
    %1626 = vmatpush.bf16.msra.mxu0 %v1218
    %1627 = vmatpush.bf16.msra.mxu0 %v1217
    %1628 = vmatpush.bf16.msra.mxu0 %v1216
    %1629 = vmatpush.bf16.msra.mxu0 %v1215
    %1630 = vmatpush.bf16.msra.mxu0 %v1214
    %1631 = vmatpush.bf16.msra.mxu0 %v1213
    %1632 = vmatmul.bf16.gmra.mxu0 %v145
    %v1633 = vpop.f32.mrf.mxu0
    %v1634 = vadd.f32 %v1620, %v1633
    %v1635 = vpop.f32.mrf.mxu0
    %v1636 = vadd.f32 %v1622, %v1635
    %1637 = vdwg.mxu0
    %1638 = vmatpush.bf16.msra.mxu0 %v1228
    %1639 = vmatpush.bf16.msra.mxu0 %v1227
    %1640 = vmatpush.bf16.msra.mxu0 %v1226
    %1641 = vmatpush.bf16.msra.mxu0 %v1225
    %1642 = vmatpush.bf16.msra.mxu0 %v1224
    %1643 = vmatpush.bf16.msra.mxu0 %v1223
    %1644 = vmatpush.bf16.msra.mxu0 %v1222
    %1645 = vmatpush.bf16.msra.mxu0 %v1221
    %1646 = vmatmul.bf16.gmra.mxu0 %v146
    %v1647 = vpop.f32.mrf.mxu0
    %v1648 = vadd.f32 %v1634, %v1647
    %v1649 = vpop.f32.mrf.mxu0
    %v1650 = vadd.f32 %v1636, %v1649
    %1651 = vdwg.mxu0
    %1652 = vmatpush.bf16.msra.mxu0 %v1236
    %1653 = vmatpush.bf16.msra.mxu0 %v1235
    %1654 = vmatpush.bf16.msra.mxu0 %v1234
    %1655 = vmatpush.bf16.msra.mxu0 %v1233
    %1656 = vmatpush.bf16.msra.mxu0 %v1232
    %1657 = vmatpush.bf16.msra.mxu0 %v1231
    %1658 = vmatpush.bf16.msra.mxu0 %v1230
    %1659 = vmatpush.bf16.msra.mxu0 %v1229
    %1660 = vmatmul.bf16.gmra.mxu0 %v147
    %v1661 = vpop.f32.mrf.mxu0
    %v1662 = vadd.f32 %v1648, %v1661
    %v1663 = vpop.f32.mrf.mxu0
    %v1664 = vadd.f32 %v1650, %v1663
    %1665 = vdwg.mxu0
    %1666 = vmatpush.bf16.msra.mxu0 %v1244
    %1667 = vmatpush.bf16.msra.mxu0 %v1243
    %1668 = vmatpush.bf16.msra.mxu0 %v1242
    %1669 = vmatpush.bf16.msra.mxu0 %v1241
    %1670 = vmatpush.bf16.msra.mxu0 %v1240
    %1671 = vmatpush.bf16.msra.mxu0 %v1239
    %1672 = vmatpush.bf16.msra.mxu0 %v1238
    %1673 = vmatpush.bf16.msra.mxu0 %v1237
    %1674 = vmatmul.bf16.gmra.mxu0 %v148
    %v1675 = vpop.f32.mrf.mxu0
    %v1676 = vadd.f32 %v1662, %v1675
    %v1677 = vpop.f32.mrf.mxu0
    %v1678 = vadd.f32 %v1664, %v1677
    %1679 = vdwg.mxu0
    %1680 = vmatpush.bf16.msra.mxu0 0
    %1681 = vmatpush.bf16.msra.mxu0 0
    %1682 = vmatpush.bf16.msra.mxu0 0
    %1683 = vmatpush.bf16.msra.mxu0 %v1412
    %1684 = vmatpush.bf16.msra.mxu0 %v1248
    %1685 = vmatpush.bf16.msra.mxu0 %v1247
    %1686 = vmatpush.bf16.msra.mxu0 %v1246
    %1687 = vmatpush.bf16.msra.mxu0 %v1245
    %1688 = vmatmul.bf16.gmra.mxu0 %v1408
    %v1689 = vpop.f32.mrf.mxu0
    %v1690 = vadd.f32 %v1676, %v1689
    %v1691 = vpop.f32.mrf.mxu0
    %v1692 = vadd.f32 %v1678, %v1691
    %1693 = vdwg.mxu0
    %v1694 = vpack.c.bf16 %v1692, %v1690
    %v1695 = vld [vmem:[#allocation6] sm:$0xf]
    %v1696 = vld [vmem:[#allocation6 + $0x4] sm:$0xf]
    %v1697 = vld [vmem:[#allocation6 + $0x8] sm:$0xf]
    %v1698 = vld [vmem:[#allocation6 + $0xc] sm:$0xf]
    %v1699 = vld [vmem:[#allocation6 + $0x10] sm:$0xf]
    %v1700 = vld [vmem:[#allocation6 + $0x14] sm:$0xf]
    %v1701 = vld [vmem:[#allocation6 + $0x18] sm:$0xf]
    %v1702 = vld [vmem:[#allocation6 + $0x1c] sm:$0xf]
    %v1703 = vld [vmem:[#allocation6 + $0x20] sm:$0xf]
    %v1704 = vld [vmem:[#allocation6 + $0x24] sm:$0xf]
    %v1705 = vld [vmem:[#allocation6 + $0x28] sm:$0xf]
    %v1706 = vld [vmem:[#allocation6 + $0x2c] sm:$0xf]
    %v1707 = vld [vmem:[#allocation6 + $0x30] sm:$0xf]
    %v1708 = vld [vmem:[#allocation6 + $0x34] sm:$0xf]
    %v1709 = vld [vmem:[#allocation6 + $0x38] sm:$0xf]
    %v1710 = vld [vmem:[#allocation6 + $0x3c] sm:$0xf]
    %v1711 = vld [vmem:[%s4] sm:$0x1]
    %v1713 = vperm.slane %v1711, 0
    %v1731 = vunpack.c.l.b16 %v1695
    %v1732 = vunpack.c.l.b16 %v1696
    %v1733 = vunpack.c.l.b16 %v1697
    %v1734 = vunpack.c.l.b16 %v1698
    %v1735 = vunpack.c.l.b16 %v1699
    %v1736 = vunpack.c.l.b16 %v1700
    %v1737 = vunpack.c.l.b16 %v1701
    %v1738 = vunpack.c.l.b16 %v1702
    %v1739 = vunpack.c.l.b16 %v1703
    %v1740 = vunpack.c.l.b16 %v1704
    %v1741 = vunpack.c.l.b16 %v1705
    %v1742 = vunpack.c.l.b16 %v1706
    %v1743 = vunpack.c.l.b16 %v1707
    %v1744 = vunpack.c.l.b16 %v1708
    %v1745 = vunpack.c.l.b16 %v1709
    %v1746 = vunpack.c.l.b16 %v1710
    %v1747 = vpack.c.b16 %v1732, %v1731
    %v1748 = vpack.c.b16 %v1734, %v1733
    %v1749 = vpack.c.b16 %v1736, %v1735
    %v1750 = vpack.c.b16 %v1738, %v1737
    %v1751 = vpack.c.b16 %v1740, %v1739
    %v1752 = vpack.c.b16 %v1742, %v1741
    %v1753 = vpack.c.b16 %v1744, %v1743
    %v1754 = vpack.c.b16 %v1746, %v1745
    %1763 = vmatpush.bf16.msra.mxu0 %v1754
    %1764 = vmatpush.bf16.msra.mxu0 %v1753
    %1765 = vmatpush.bf16.msra.mxu0 %v1752
    %1766 = vmatpush.bf16.msra.mxu0 %v1751
    %1767 = vmatpush.bf16.msra.mxu0 %v1750
    %1768 = vmatpush.bf16.msra.mxu0 %v1749
    %1769 = vmatpush.bf16.msra.mxu0 %v1748
    %1770 = vmatpush.bf16.msra.mxu0 %v1747
    %1771 = vmatmul.bf16.gmra.mxu0 %v1694
    %v1772 = vpop.f32.mrf.mxu0
    %v1773 = vadd.f32 %v1713, %v1772
    %v1774 = vpop.f32.mrf.mxu0
    %v1775 = vadd.f32 %v1713, %v1774
    %1776 = vdwg.mxu0
    %v1777 = vtanh.pop %v1773
    %v1778 = vtanh.pop %v1775
    %v1779 = vpack.c.bf16 %v1778, %v1777
    %v1780 = vld [vmem:[#allocation7] sm:$0xf]
    %v1781 = vld [vmem:[#allocation7 + $0x4] sm:$0xf]
    %v1782 = vld [vmem:[#allocation7 + $0x8] sm:$0xf]
    %v1783 = vld [vmem:[#allocation7 + $0xc] sm:$0xf]
    %v1784 = vld [vmem:[#allocation7 + $0x10] sm:$0xf]
    %v1785 = vld [vmem:[#allocation7 + $0x14] sm:$0xf]
    %v1786 = vld [vmem:[#allocation7 + $0x18] sm:$0xf]
    %v1787 = vld [vmem:[#allocation7 + $0x1c] sm:$0xf]
    %v1788 = vld [vmem:[#allocation7 + $0x20] sm:$0xf]
    %v1789 = vld [vmem:[#allocation7 + $0x24] sm:$0xf]
    %v1790 = vld [vmem:[#allocation7 + $0x28] sm:$0xf]
    %v1791 = vld [vmem:[#allocation7 + $0x2c] sm:$0xf]
    %v1792 = vld [vmem:[#allocation7 + $0x30] sm:$0xf]
    %v1793 = vld [vmem:[#allocation7 + $0x34] sm:$0xf]
    %v1794 = vld [vmem:[#allocation7 + $0x38] sm:$0xf]
    %v1795 = vld [vmem:[#allocation7 + $0x3c] sm:$0xf]
    %v1796 = vld [vmem:[%s6] sm:$0x1]
    %v1798 = vperm.slane %v1796, 0
    %v1816 = vunpack.c.l.b16 %v1780
    %v1817 = vunpack.c.l.b16 %v1781
    %v1818 = vunpack.c.l.b16 %v1782
    %v1819 = vunpack.c.l.b16 %v1783
    %v1820 = vunpack.c.l.b16 %v1784
    %v1821 = vunpack.c.l.b16 %v1785
    %v1822 = vunpack.c.l.b16 %v1786
    %v1823 = vunpack.c.l.b16 %v1787
    %v1824 = vunpack.c.l.b16 %v1788
    %v1825 = vunpack.c.l.b16 %v1789
    %v1826 = vunpack.c.l.b16 %v1790
    %v1827 = vunpack.c.l.b16 %v1791
    %v1828 = vunpack.c.l.b16 %v1792
    %v1829 = vunpack.c.l.b16 %v1793
    %v1830 = vunpack.c.l.b16 %v1794
    %v1831 = vunpack.c.l.b16 %v1795
    %v1832 = vpack.c.b16 %v1817, %v1816
    %v1833 = vpack.c.b16 %v1819, %v1818
    %v1834 = vpack.c.b16 %v1821, %v1820
    %v1835 = vpack.c.b16 %v1823, %v1822
    %v1836 = vpack.c.b16 %v1825, %v1824
    %v1837 = vpack.c.b16 %v1827, %v1826
    %v1838 = vpack.c.b16 %v1829, %v1828
    %v1839 = vpack.c.b16 %v1831, %v1830
    %1848 = vmatpush.bf16.msra.mxu0 %v1839
    %1849 = vmatpush.bf16.msra.mxu0 %v1838
    %1850 = vmatpush.bf16.msra.mxu0 %v1837
    %1851 = vmatpush.bf16.msra.mxu0 %v1836
    %1852 = vmatpush.bf16.msra.mxu0 %v1835
    %1853 = vmatpush.bf16.msra.mxu0 %v1834
    %1854 = vmatpush.bf16.msra.mxu0 %v1833
    %1855 = vmatpush.bf16.msra.mxu0 %v1832
    %1856 = vmatmul.bf16.gmra.mxu0 %v1779
    %v1857 = vpop.f32.mrf.mxu0
    %v1858 = vadd.f32 %v1798, %v1857
    %v1859 = vpop.f32.mrf.mxu0
    %v1860 = vadd.f32 %v1798, %v1859
    %1861 = vdwg.mxu0
    %vm1862 = vcmask 15360
    %1863 = vst.msk [vmem:[%s7] sm:$0xff] %vm1862, %v1858
    %1864 = vst.msk [vmem:[%s7 + $0x8] sm:$0xff] %vm1862, %v1860
    // Predicated region
    $region46: #{tpu_custom_call.1} parent=1 // pred_check
      _
    $region47: #{tpu_custom_call.1} parent=1 // pred_check_branch
      %1866 = sbr.rel (0) target = $region49
    $region48: #{tpu_custom_call.1} parent=1 // pred_region
      _
    $region49: #{tpu_custom_call.1} parent=1 // pred_fallthru
      _
    // Predicated region
    $region50: #{tpu_custom_call.1} parent=1 // pred_check
      _
    $region51: #{tpu_custom_call.1} parent=1 // pred_check_branch
      %1868 = sbr.rel (0) target = $region53
    $region52: #{tpu_custom_call.1} parent=1 // pred_region
      _
    $region53: #{tpu_custom_call.1} parent=1 // pred_fallthru
      _
    %1869 = vsyncpa [#allocation3], 1
    %1870 = vsyncpa [#allocation5], 1
    %1871 = vsyncpa [#allocation8], 1

</llo_original>
